<compile_context>
chip_gen: v7x
topology: tpu7x:2x2x1
jax: 0.10.0
libtpu: 0.0.40
codegen_flags: <defaults>
</compile_context>

<pallas_src>
import jax
import jax.numpy as jnp
from jax import lax
from jax.experimental import pallas as pl
from jax.experimental.pallas import tpu as pltpu


def _round_up(x, m):
    return ((x + m - 1) // m) * m


# ----------------------------------------------------------------------------
# Bidirectional LSTM encoder (plain-JAX glue, emulates run_lstm with packing:
# outputs past the true length are zeroed, backward direction starts at len-1).
# ----------------------------------------------------------------------------
def _lstm_dir(x, Wih, Whh, bih, bhh):
    B, L, _ = x.shape
    Hh = Whh.shape[1]

    def step(carry, xt):
        h, c = carry
        gates = xt @ Wih.T + h @ Whh.T + bih + bhh
        i, f, g, o = jnp.split(gates, 4, axis=-1)
        i = jax.nn.sigmoid(i)
        f = jax.nn.sigmoid(f)
        g = jnp.tanh(g)
        o = jax.nn.sigmoid(o)
        c = f * c + i * g
        h = o * jnp.tanh(c)
        return (h, c), h

    h0 = jnp.zeros((B, Hh), x.dtype)
    c0 = jnp.zeros((B, Hh), x.dtype)
    _, hs = lax.scan(step, (h0, c0), jnp.swapaxes(x, 0, 1))
    return jnp.swapaxes(hs, 0, 1)  # (B, L, Hh)


def run_bilstm(x, lengths, p):
    B, L, _ = x.shape
    fwd = _lstm_dir(x, p["Wih_f"], p["Whh_f"], p["bih_f"], p["bhh_f"])
    idx = jnp.clip(lengths[:, None] - 1 - jnp.arange(L)[None, :], 0, L - 1)
    idx3 = jnp.broadcast_to(idx[:, :, None], x.shape)
    x_rev = jnp.take_along_axis(x, idx3, axis=1)
    bwd_rev = _lstm_dir(x_rev, p["Wih_b"], p["Whh_b"], p["bih_b"], p["bhh_b"])
    idx3h = jnp.broadcast_to(idx[:, :, None], bwd_rev.shape)
    bwd = jnp.take_along_axis(bwd_rev, idx3h, axis=1)
    out = jnp.concatenate([fwd, bwd], axis=-1)
    mask = (jnp.arange(L)[None, :] < lengths[:, None])[:, :, None]
    return out * mask.astype(out.dtype)


# ----------------------------------------------------------------------------
# One-time host-side weight packing (hoisted out of the per-call path).
# Weight convention in this synthetic setup: W is (in, out), applied as x @ W.
# use_hs is folded into the packed hs weights/biases. Zero lane/row padding is
# numerically inert (padded lanes stay zero end to end).
# ----------------------------------------------------------------------------
def pack_keyword_predictor_params(head, H, use_hs=True):
    attW, attB, outW, outB, numW, numB, kwW, kwB = head
    f32 = jnp.float32
    uhs = f32(1.0 if use_hs else 0.0)
    Hp = _round_up(max(H, 1), 128)

    def padW(w):  # (H, H) -> (Hp, Hp)
        return jnp.pad(w.astype(f32), ((0, Hp - w.shape[0]), (0, Hp - w.shape[1])))

    def padb(b):  # (H,) -> (Hp,)
        return jnp.pad(b.astype(f32), (0, Hp - b.shape[0]))

    def lanes(x, width):  # pad last dim to `width`
        return jnp.pad(x, ((0, 0), (0, width - x.shape[1])))

    # Fused attention projections: [q_num_att | q_att] and [hs_num_att | hs_att].
    Wq_att = jnp.concatenate([padW(attW[0]), padW(attW[2])], axis=1)      # (Hp, 2Hp)
    Whs_att = jnp.concatenate([padW(attW[1]), padW(attW[3])], axis=1)     # (Hp, 2Hp)
    # Head matmuls with stacked contraction dims.
    W_num = jnp.concatenate([padW(outW[0]), uhs * padW(outW[1])], axis=0)  # (2Hp, Hp)
    W_kw = jnp.concatenate([padW(outW[2]), uhs * padW(outW[3]),
                            padW(outW[4])], axis=0)                        # (3Hp, Hp)
    numW_p = jnp.pad(numW.astype(f32),
                     ((0, Hp - numW.shape[0]), (0, Hp - numW.shape[1])))   # (Hp, Hp)

    # Single bf16 weight slab: rows at 128-aligned offsets.
    W_slab = jnp.concatenate(
        [Wq_att,                       # rows [0      : Hp  ]
         Whs_att,                      # rows [Hp     : 2Hp ]
         lanes(W_num, 2 * Hp),         # rows [2Hp    : 4Hp ]
         lanes(W_kw, 2 * Hp),          # rows [4Hp    : 7Hp ]
         lanes(numW_p, 2 * Hp)],       # rows [7Hp    : 8Hp ]
        axis=0).astype(jnp.bfloat16)   # (8Hp, 2Hp)

    def row(v):  # 1-D -> (1, 2Hp), f32
        return jnp.pad(v.astype(f32), (0, 2 * Hp - v.shape[0]))[None, :]

    # Single f32 bias/vector slab (8 rows = one sublane tile).
    V_slab = jnp.concatenate(
        [row(jnp.concatenate([padb(attB[0]), padb(attB[2])])),      # 0: bq  [num|kw]
         row(jnp.concatenate([padb(attB[1]), padb(attB[3])])),      # 1: bhs [num|kw]
         row(padb(outB[0]) + uhs * padb(outB[1])),                  # 2: b_num
         row(padb(outB[2]) + uhs * padb(outB[3]) + padb(outB[4])),  # 3: b_kw
         row(padb(kwW[:, 0])),                                      # 4: kw-head weight row
         row(numB.reshape(-1)),                                     # 5: numB (lanes 0:4)
         row(kwB.reshape(-1)),                                      # 6: kwB  (lane 0)
         jnp.zeros((1, 2 * Hp), f32)],                              # 7: pad
        axis=0)                                                     # (8, 2Hp)

    return {"W": W_slab, "V": V_slab, "Hp": Hp, "H": H}


# ----------------------------------------------------------------------------
# Pallas kernel: whole batch block per grid step. Fused projections, masked
# softmax, single weighted-sum einsum per encoder, both score heads, one
# lane-dense output slab.
# ----------------------------------------------------------------------------
def _kw_predictor_kernel(q_ref, hs_ref, kw_ref, lens_ref, W_ref, V_ref, out_ref):
    f32 = jnp.float32
    bf16 = jnp.bfloat16
    Bb, Lq, Hp = q_ref.shape
    Lhs = hs_ref.shape[1]
    Lkw = kw_ref.shape[1]
    out_lanes = out_ref.shape[1]

    # ---- hoisted loads -------------------------------------------------------
    q = q_ref[...]                                   # (Bb, Lq,  Hp) bf16
    hs = hs_ref[...]                                 # (Bb, Lhs, Hp) bf16
    kw = kw_ref[...]                                 # (Bb, Lkw, Hp) bf16
    lens = lens_ref[...]                             # (Bb, 2) int32
    q_valid = lens[:, 0:1].reshape(Bb, 1, 1)
    hs_valid = lens[:, 1:2].reshape(Bb, 1, 1)

    # Packed weight slab: static slices at 128-aligned row/lane offsets.
    Wq = W_ref[0:Hp, :]                              # (Hp, 2Hp)  [num | kw]
    Whs = W_ref[Hp:2 * Hp, :]                        # (Hp, 2Hp)
    Wnum = W_ref[2 * Hp:4 * Hp, 0:Hp]                # (2Hp, Hp)  [q ; use_hs*hs]
    Wkw = W_ref[4 * Hp:7 * Hp, 0:Hp]                 # (3Hp, Hp)  [q ; use_hs*hs ; kw]
    NumW = W_ref[7 * Hp:8 * Hp, 0:Hp]                # (Hp, Hp)   (lanes 0:4 meaningful)

    bq = V_ref[0:1, :]                               # (1, 2Hp) f32
    bhs = V_ref[1:2, :]
    bnum = V_ref[2:3, 0:Hp]
    bkw = V_ref[3:4, 0:Hp]
    kwW = V_ref[4:5, 0:Hp].reshape(1, 1, Hp)
    numB = V_ref[5:6, 0:Hp]
    kwB = V_ref[6:7, 0:1]

    def project(enc, L, W, b):
        # bf16 MXU matmul, f32 accumulate, f32 bias, back to bf16 as an operand.
        p = jnp.dot(enc.reshape(Bb * L, Hp), W, preferred_element_type=f32) + b
        return p.reshape(Bb, L, 2 * Hp).astype(bf16)

    proj_q = project(q, Lq, Wq, bq)                  # (Bb, Lq,  2Hp)
    proj_hs = project(hs, Lhs, Whs, bhs)             # (Bb, Lhs, 2Hp)

    def masked_softmax(att, valid):
        col = lax.broadcasted_iota(jnp.int32, att.shape, 2)
        # -100 fill matches the PyTorch module (not -inf); padded batch rows
        # (len == 0) therefore get a finite, uniform softmax — no NaNs.
        att = jnp.where(col < valid, att, jnp.float32(-100.0))
        att = att - jnp.max(att, axis=-1, keepdims=True)
        e = jnp.exp(att)
        return e * pl.reciprocal(jnp.sum(e, axis=-1, keepdims=True), approx=True)

    def att_probs(proj_half, valid):
        # Contract the trailing feature axes — no explicit transpose/XLU pass.
        s = jnp.einsum('bkh,blh->bkl', kw, proj_half, preferred_element_type=f32)
        return masked_softmax(s, valid)

    p_q_num = att_probs(proj_q[:, :, 0:Hp], q_valid)        # (Bb, Lkw, Lq)
    p_q_kw = att_probs(proj_q[:, :, Hp:2 * Hp], q_valid)
    p_hs_num = att_probs(proj_hs[:, :, 0:Hp], hs_valid)     # (Bb, Lkw, Lhs)
    p_hs_kw = att_probs(proj_hs[:, :, Hp:2 * Hp], hs_valid)

    def weighted(p_num, p_kw, enc):
        # Row-stack the kw-summed num-head probs on top of the per-keyword probs
        # so each encoder needs exactly ONE weighted-sum einsum (half the MXU
        # pushes of the naive 2-einsum-per-encoder form).
        p_all = jnp.concatenate(
            [jnp.sum(p_num, axis=1, keepdims=True), p_kw], axis=1).astype(bf16)
        w = jnp.einsum('bkl,blh->bkh', p_all, enc, preferred_element_type=f32)
        return w[:, 0, :], w[:, 1:, :]               # (Bb, Hp), (Bb, Lkw, Hp)

    q_w_num, q_w = weighted(p_q_num, p_q_kw, q)
    hs_w_num, hs_w = weighted(p_hs_num, p_hs_kw, hs)

    # ---- kw_num head ---------------------------------------------------------
    x_num = jnp.concatenate([q_w_num, hs_w_num], axis=-1).astype(bf16)   # (Bb, 2Hp)
    num_hidden = jnp.dot(x_num, Wnum, preferred_element_type=f32) + bnum
    num_full = jnp.dot(jnp.tanh(num_hidden).astype(bf16), NumW,
                       preferred_element_type=f32) + numB                # (Bb, Hp)

    # ---- kw head -------------------------------------------------------------
    x_kw = jnp.concatenate([q_w.astype(bf16), hs_w.astype(bf16), kw],
                           axis=-1)                                      # (Bb, Lkw, 3Hp)
    hidden = (jnp.dot(x_kw.reshape(Bb * Lkw, 3 * Hp), Wkw,
                      preferred_element_type=f32) + bkw).reshape(Bb, Lkw, Hp)
    # Lane-dense score head: elementwise mul + lane reduction (no (N,1) matmul).
    kw_score = jnp.sum(jnp.tanh(hidden) * kwW, axis=-1) + kwB            # (Bb, Lkw)

    # ---- single lane-dense output slab: [num(4) | kw(Lkw) | zero pad] --------
    parts = [num_full[:, 0:4], kw_score]
    pad = out_lanes - 4 - Lkw
    if pad > 0:
        parts.append(jnp.zeros((Bb, pad), f32))
    out_ref[...] = jnp.concatenate(parts, axis=-1)


def keyword_predictor_forward(q_enc, hs_enc, kw_enc, q_len, hs_len, packed,
                              num_batch_blocks=1):
    """Forward pass using pre-packed weights (see pack_keyword_predictor_params).

    num_batch_blocks: keep 1 on single-TC chips (v5e/v6e); >= 2 only for v7x
    megacore (and only when VMEM or occupancy demands it).
    """
    f32 = jnp.float32
    bf16 = jnp.bfloat16
    B, Lq, H = q_enc.shape
    Lhs = hs_enc.shape[1]
    Lkw = kw_enc.shape[1]
    Hp = packed["Hp"]
    W_slab = packed["W"]
    V_slab = packed["V"]
    OUT = _round_up(4 + Lkw, 128)     # lane-dense output slab width

    # Per-call activation prep: pad feature dim to Hp (zero lanes are inert),
    # cast to bf16 (full-rate MXU, half the HBM->VMEM bytes).
    def pad_feat(x):
        return jnp.pad(x.astype(f32), ((0, 0), (0, 0), (0, Hp - H))).astype(bf16)

    q_p = pad_feat(q_enc)
    hs_p = pad_feat(hs_enc)
    kw_p = pad_feat(kw_enc)
    lens = jnp.stack([q_len.astype(jnp.int32), hs_len.astype(jnp.int32)], axis=1)

    nblk = max(1, min(int(num_batch_blocks), B))
    Bb = -(-B // nblk)                 # ceil
    if nblk > 1:
        # Keep sublane dims unmasked / lowering-safe when the batch is split.
        Bb = _round_up(Bb, 8)
    Bp = nblk * Bb
    if Bp != B:
        pb = Bp - B
        q_p = jnp.pad(q_p, ((0, pb), (0, 0), (0, 0)))
        hs_p = jnp.pad(hs_p, ((0, pb), (0, 0), (0, 0)))
        kw_p = jnp.pad(kw_p, ((0, pb), (0, 0), (0, 0)))
        # Padded rows get len = 0 -> all logits -100 -> finite uniform softmax;
        # they are sliced off below. Do NOT "fix" to -inf (would produce 0/0).
        lens = jnp.pad(lens, ((0, pb), (0, 0)))

    # Explicit VMEM budget, sized against v7x's 64 MiB/TC (generous headroom
    # for double-buffered blocks + intermediates; tiny at these shapes).
    blk_bytes = (Bb * (Lq + Lhs + Lkw) * Hp * 2          # bf16 activation blocks
                 + W_slab.size * 2 + V_slab.size * 4     # weight slabs
                 + Bb * 2 * 4 + Bb * OUT * 4)            # lens + output slab
    vmem_limit = int(min(64 * 2 ** 20, max(16 * 2 ** 20, 8 * blk_bytes)))

    grid_spec = pltpu.PrefetchScalarGridSpec(
        num_scalar_prefetch=0,
        grid=(nblk,),
        in_specs=[
            pl.BlockSpec((Bb, Lq, Hp), lambda i: (i, 0, 0)),
            pl.BlockSpec((Bb, Lhs, Hp), lambda i: (i, 0, 0)),
            pl.BlockSpec((Bb, Lkw, Hp), lambda i: (i, 0, 0)),
            pl.BlockSpec((Bb, 2), lambda i: (i, 0)),
            pl.BlockSpec((8 * Hp, 2 * Hp), lambda i: (0, 0)),   # constant W slab
            pl.BlockSpec((8, 2 * Hp), lambda i: (0, 0)),        # constant V slab
        ],
        out_specs=pl.BlockSpec((Bb, OUT), lambda i: (i, 0)),
    )

    out = pl.pallas_call(
        _kw_predictor_kernel,
        grid_spec=grid_spec,
        out_shape=jax.ShapeDtypeStruct((Bp, OUT), f32),
        compiler_params=pltpu.CompilerParams(
            dimension_semantics=("parallel",),
            vmem_limit_bytes=vmem_limit),
    )(q_p, hs_p, kw_p, lens, W_slab, V_slab)

    # Slice the lane-dense slab apart on the host.
    return out[:B, 0:4], out[:B, 4:4 + Lkw]


# ----------------------------------------------------------------------------
# Pure-JAX reference (unfused, unpadded, f32) for the correctness check.
# ----------------------------------------------------------------------------
def reference_forward(q_enc, hs_enc, kw_enc, q_len, hs_len, head, use_hs=True):
    attW, attB, outW, outB, numW, numB, kwW, kwB = head
    uhs = 1.0 if use_hs else 0.0

    def one(q, hs, kw, ql, hl):
        def attend(enc, W, bvec, valid):
            proj = enc @ W + bvec
            att = kw @ proj.T
            col = jnp.arange(enc.shape[0])[None, :]
            att = jnp.where(col < valid, att, -100.0)
            return jax.nn.softmax(att, axis=-1)

        pqn = attend(q, attW[0], attB[0], ql)
        phn = attend(hs, attW[1], attB[1], hl)
        qwn = (pqn @ q).sum(0)
        hwn = (phn @ hs).sum(0)
        numh = qwn @ outW[0] + outB[0] + uhs * (hwn @ outW[1] + outB[1])
        nsc = jnp.tanh(numh) @ numW + numB[0]

        pq = attend(q, attW[2], attB[2], ql)
        ph = attend(hs, attW[3], attB[3], hl)
        qw = pq @ q
        hw = ph @ hs
        hid = (qw @ outW[2] + outB[2]
               + uhs * (hw @ outW[3] + outB[3])
               + kw @ outW[4] + outB[4])
        ksc = (jnp.tanh(hid) @ kwW + kwB[0])[:, 0]
        return nsc, ksc

    return jax.vmap(one)(q_enc, hs_enc, kw_enc, q_len, hs_len)


# ----------------------------------------------------------------------------
# Deterministic parameter init (synthetic; shapes follow the module __init__).
# ----------------------------------------------------------------------------
def init_lstm_params(key, d_in, hh, scale=0.1):
    ks = jax.random.split(key, 8)
    n = lambda k, s: (jax.random.normal(k, s) * scale).astype(jnp.float32)
    return dict(
        Wih_f=n(ks[0], (4 * hh, d_in)), Whh_f=n(ks[1], (4 * hh, hh)),
        bih_f=n(ks[2], (4 * hh,)), bhh_f=n(ks[3], (4 * hh,)),
        Wih_b=n(ks[4], (4 * hh, d_in)), Whh_b=n(ks[5], (4 * hh, hh)),
        bih_b=n(ks[6], (4 * hh,)), bhh_b=n(ks[7], (4 * hh,)),
    )


def init_head_params(key, H, scale=0.1):
    ks = jax.random.split(key, 8)
    n = lambda k, s: (jax.random.normal(k, s) * scale).astype(jnp.float32)
    attW = n(ks[0], (4, H, H))   # q_num_att, hs_num_att, q_att, hs_att (in->out)
    attB = n(ks[1], (4, H))
    outW = n(ks[2], (5, H, H))   # kw_num_out_q, kw_num_out_hs, kw_out_q, kw_out_hs, kw_out_kw
    outB = n(ks[3], (5, H))
    numW = n(ks[4], (H, 4))      # kw_num_out final Linear(N_h, 4)
    numB = n(ks[5], (1, 4))
    kwW = n(ks[6], (H, 1))       # kw_out final Linear(N_h, 1)
    kwB = n(ks[7], (1, 1))
    return (attW, attB, outW, outB, numW, numB, kwW, kwB)


if __name__ == "__main__":
    key = jax.random.PRNGKey(0)
    B, N_word, N_col, N_h = 2, 16, 12, 32
    Lq, Lhs, Lkw = 8, 6, 4
    use_hs = True

    k_in, k_q, k_hs, k_kw, k_head = jax.random.split(key, 5)
    ki = jax.random.split(k_in, 3)
    q_emb = jax.random.normal(ki[0], (B, Lq, N_word), dtype=jnp.float32)
    hs_emb = jax.random.normal(ki[1], (B, Lhs, N_col), dtype=jnp.float32)
    kw_emb = jax.random.normal(ki[2], (B, Lkw, N_col), dtype=jnp.float32)
    q_len = jnp.array([8, 5], dtype=jnp.int32)
    hs_len = jnp.array([6, 4], dtype=jnp.int32)
    kw_len = jnp.array([4, 4], dtype=jnp.int32)

    Hh = N_h // 2
    q_lstm_p = init_lstm_params(k_q, N_word, Hh)
    hs_lstm_p = init_lstm_params(k_hs, N_col, Hh)
    kw_lstm_p = init_lstm_params(k_kw, N_col, Hh)
    head = init_head_params(k_head, N_h)

    # One-time weight packing (hoisted out of the per-call critical path).
    packed = pack_keyword_predictor_params(head, N_h, use_hs=use_hs)

    # Encoders (plain JAX glue equivalent to run_lstm).
    q_enc = run_bilstm(q_emb, q_len, q_lstm_p)      # (B, Lq, N_h)
    hs_enc = run_bilstm(hs_emb, hs_len, hs_lstm_p)  # (B, Lhs, N_h)
    kw_enc = run_bilstm(kw_emb, kw_len, kw_lstm_p)  # (B, Lkw, N_h)

    # Pallas kernel forward (single grid step; set num_batch_blocks>=2 on v7x only).
    kw_num_score, kw_score = keyword_predictor_forward(
        q_enc, hs_enc, kw_enc, q_len, hs_len, packed, num_batch_blocks=1)
    jax.block_until_ready((kw_num_score, kw_score))

    # Sanity check against the pure-JAX f32 reference (kernel uses bf16 MXU
    # operands with f32 accumulation, hence the slightly relaxed tolerance).
    ref_num, ref_kw = reference_forward(
        q_enc, hs_enc, kw_enc, q_len, hs_len, head, use_hs=use_hs)
    assert kw_num_score.shape == (B, 4) and kw_score.shape == (B, Lkw)
    assert jnp.allclose(kw_num_score, ref_num, atol=2e-2, rtol=2e-2)
    assert jnp.allclose(kw_score, ref_kw, atol=2e-2, rtol=2e-2)

    print("KERNEL_OK")
</pallas_src>

<mosaic_0001>
module attributes {stable_mosaic.version = 11 : i64} {
  func.func @_kw_predictor_kernel(%arg0: i32, %arg1: memref<2x8x128xbf16, #tpu.memory_space<vmem>>, %arg2: memref<2x6x128xbf16, #tpu.memory_space<vmem>>, %arg3: memref<2x4x128xbf16, #tpu.memory_space<vmem>>, %arg4: memref<2x2xi32, #tpu.memory_space<vmem>>, %arg5: memref<1024x256xbf16, #tpu.memory_space<vmem>>, %arg6: memref<8x256xf32, #tpu.memory_space<vmem>>, %arg7: memref<2x128xf32, #tpu.memory_space<vmem>>) attributes {dimension_semantics = [#tpu.dimension_semantics<parallel>], iteration_bounds = array<i64: 1>, scalar_prefetch = 0 : i64, scratch_operands = 0 : i64, tpu.core_type = #tpu.core_type<tc>, window_params = [{transform_indices = @transform_0, window_bounds = array<i64: 2, 8, 128>}, {transform_indices = @transform_1, window_bounds = array<i64: 2, 6, 128>}, {transform_indices = @transform_2, window_bounds = array<i64: 2, 4, 128>}, {transform_indices = @transform_3, window_bounds = array<i64: 2, 2>}, {pipeline_mode = #tpu.pipeline_mode<synchronous>, transform_indices = @transform_4, window_bounds = array<i64: 1024, 256>}, {pipeline_mode = #tpu.pipeline_mode<synchronous>, transform_indices = @transform_5, window_bounds = array<i64: 8, 256>}, {transform_indices = @transform_6, window_bounds = array<i64: 2, 128>}]} {
    %c0 = arith.constant 0 : index
    %c0_0 = arith.constant 0 : index
    %c0_1 = arith.constant 0 : index
    %0 = vector.load %arg1[%c0, %c0_0, %c0_1] : memref<2x8x128xbf16, #tpu.memory_space<vmem>>, vector<2x8x128xbf16>
    %c0_2 = arith.constant 0 : index
    %c0_3 = arith.constant 0 : index
    %c0_4 = arith.constant 0 : index
    %1 = vector.load %arg2[%c0_2, %c0_3, %c0_4] : memref<2x6x128xbf16, #tpu.memory_space<vmem>>, vector<2x6x128xbf16>
    %c0_5 = arith.constant 0 : index
    %c0_6 = arith.constant 0 : index
    %c0_7 = arith.constant 0 : index
    %2 = vector.load %arg3[%c0_5, %c0_6, %c0_7] : memref<2x4x128xbf16, #tpu.memory_space<vmem>>, vector<2x4x128xbf16>
    %c0_8 = arith.constant 0 : index
    %c0_9 = arith.constant 0 : index
    %3 = vector.load %arg4[%c0_8, %c0_9] : memref<2x2xi32, #tpu.memory_space<vmem>>, vector<2x2xi32>
    %4 = vector.extract_strided_slice %3 {offsets = [0, 0], sizes = [2, 1], strides = [1, 1]} : vector<2x2xi32> to vector<2x1xi32>
    %5 = vector.shape_cast %4 : vector<2x1xi32> to vector<2x1x1xi32>
    %6 = vector.extract_strided_slice %3 {offsets = [0, 1], sizes = [2, 1], strides = [1, 1]} : vector<2x2xi32> to vector<2x1xi32>
    %7 = vector.shape_cast %6 : vector<2x1xi32> to vector<2x1x1xi32>
    %c0_10 = arith.constant 0 : index
    %c0_11 = arith.constant 0 : index
    %8 = vector.load %arg5[%c0_10, %c0_11] : memref<1024x256xbf16, #tpu.memory_space<vmem>>, vector<128x256xbf16>
    %c128 = arith.constant 128 : index
    %c0_12 = arith.constant 0 : index
    %9 = vector.load %arg5[%c128, %c0_12] : memref<1024x256xbf16, #tpu.memory_space<vmem>>, vector<128x256xbf16>
    %c256 = arith.constant 256 : index
    %c0_13 = arith.constant 0 : index
    %10 = vector.load %arg5[%c256, %c0_13] : memref<1024x256xbf16, #tpu.memory_space<vmem>>, vector<256x128xbf16>
    %c512 = arith.constant 512 : index
    %c0_14 = arith.constant 0 : index
    %11 = vector.load %arg5[%c512, %c0_14] : memref<1024x256xbf16, #tpu.memory_space<vmem>>, vector<384x128xbf16>
    %c896 = arith.constant 896 : index
    %c0_15 = arith.constant 0 : index
    %12 = vector.load %arg5[%c896, %c0_15] : memref<1024x256xbf16, #tpu.memory_space<vmem>>, vector<128x128xbf16>
    %c0_16 = arith.constant 0 : index
    %c0_17 = arith.constant 0 : index
    %13 = vector.load %arg6[%c0_16, %c0_17] : memref<8x256xf32, #tpu.memory_space<vmem>>, vector<1x256xf32>
    %c1 = arith.constant 1 : index
    %c0_18 = arith.constant 0 : index
    %14 = vector.load %arg6[%c1, %c0_18] : memref<8x256xf32, #tpu.memory_space<vmem>>, vector<1x256xf32>
    %c2 = arith.constant 2 : index
    %c0_19 = arith.constant 0 : index
    %15 = vector.load %arg6[%c2, %c0_19] : memref<8x256xf32, #tpu.memory_space<vmem>>, vector<1x128xf32>
    %c3 = arith.constant 3 : index
    %c0_20 = arith.constant 0 : index
    %16 = vector.load %arg6[%c3, %c0_20] : memref<8x256xf32, #tpu.memory_space<vmem>>, vector<1x128xf32>
    %c4 = arith.constant 4 : index
    %c0_21 = arith.constant 0 : index
    %17 = vector.load %arg6[%c4, %c0_21] : memref<8x256xf32, #tpu.memory_space<vmem>>, vector<1x128xf32>
    %18 = vector.shape_cast %17 : vector<1x128xf32> to vector<1x1x128xf32>
    %c5 = arith.constant 5 : index
    %c0_22 = arith.constant 0 : index
    %19 = vector.load %arg6[%c5, %c0_22] : memref<8x256xf32, #tpu.memory_space<vmem>>, vector<1x128xf32>
    %c6 = arith.constant 6 : index
    %c0_23 = arith.constant 0 : index
    %20 = vector.load %arg6[%c6, %c0_23] : memref<8x256xf32, #tpu.memory_space<vmem>>, vector<1x1xf32>
    %21 = vector.shape_cast %0 : vector<2x8x128xbf16> to vector<16x128xbf16>
    %cst = arith.constant dense<0.000000e+00> : vector<16x256xf32>
    %22 = tpu.matmul %21, %8, %cst {dimension_numbers = #tpu.dot_dimension_numbers<[1], [0], [0], [1], [0, 0, 1, 1], [], []>} : vector<16x128xbf16>, vector<128x256xbf16>, vector<16x256xf32> -> vector<16x256xf32>
    %23 = vector.broadcast %13 : vector<1x256xf32> to vector<16x256xf32>
    %24 = arith.addf %22, %23 : vector<16x256xf32>
    %25 = vector.shape_cast %24 : vector<16x256xf32> to vector<2x8x256xf32>
    %26 = arith.truncf %25 : vector<2x8x256xf32> to vector<2x8x256xbf16>
    %27 = vector.shape_cast %1 : vector<2x6x128xbf16> to vector<12x128xbf16>
    %cst_24 = arith.constant dense<0.000000e+00> : vector<12x256xf32>
    %28 = tpu.matmul %27, %9, %cst_24 {dimension_numbers = #tpu.dot_dimension_numbers<[1], [0], [0], [1], [0, 0, 1, 1], [], []>} : vector<12x128xbf16>, vector<128x256xbf16>, vector<12x256xf32> -> vector<12x256xf32>
    %29 = vector.broadcast %14 : vector<1x256xf32> to vector<12x256xf32>
    %30 = arith.addf %28, %29 : vector<12x256xf32>
    %31 = vector.shape_cast %30 : vector<12x256xf32> to vector<2x6x256xf32>
    %32 = arith.truncf %31 : vector<2x6x256xf32> to vector<2x6x256xbf16>
    %33 = vector.extract_strided_slice %26 {offsets = [0, 0, 0], sizes = [2, 8, 128], strides = [1, 1, 1]} : vector<2x8x256xbf16> to vector<2x8x128xbf16>
    "tpu.trace_start"() <{level = 10 : i32, message = "bkh,blh->bkl"}> : () -> ()
    %cst_25 = arith.constant dense<0.000000e+00> : vector<2x4x8xf32>
    %34 = tpu.matmul %2, %33, %cst_25 {dimension_numbers = #tpu.dot_dimension_numbers<[2], [2], [1], [1], [0, 0, 0, 1, 1, 1], [0], [0]>} : vector<2x4x128xbf16>, vector<2x8x128xbf16>, vector<2x4x8xf32> -> vector<2x4x8xf32>
    "tpu.trace_stop"() : () -> ()
    %35 = tpu.iota {dimensions = array<i32: 2>} : vector<2x4x8xi32>
    %36 = vector.broadcast %5 : vector<2x1x1xi32> to vector<2x4x8xi32>
    %37 = arith.cmpi slt, %35, %36 : vector<2x4x8xi32>
    %cst_26 = arith.constant -1.000000e+02 : f32
    %38 = vector.broadcast %cst_26 : f32 to vector<2x4x8xf32>
    %39 = arith.select %37, %34, %38 : vector<2x4x8xi1>, vector<2x4x8xf32>
    %cst_27 = arith.constant dense<0xFF800000> : vector<2x4xf32>
    %40 = vector.multi_reduction <maximumf>, %39, %cst_27 [2] : vector<2x4x8xf32> to vector<2x4xf32>
    %41 = vector.shape_cast %40 : vector<2x4xf32> to vector<2x4x1xf32>
    %42 = vector.broadcast %41 : vector<2x4x1xf32> to vector<2x4x8xf32>
    %43 = arith.subf %39, %42 : vector<2x4x8xf32>
    %44 = math.exp %43 : vector<2x4x8xf32>
    %cst_28 = arith.constant dense<0.000000e+00> : vector<2x4xf32>
    %45 = vector.multi_reduction <add>, %44, %cst_28 [2] : vector<2x4x8xf32> to vector<2x4xf32>
    %46 = vector.shape_cast %45 : vector<2x4xf32> to vector<2x4x1xf32>
    %47 = tpu.reciprocal %46 {approx = true} : vector<2x4x1xf32> -> vector<2x4x1xf32>
    %48 = vector.broadcast %47 : vector<2x4x1xf32> to vector<2x4x8xf32>
    %49 = arith.mulf %44, %48 : vector<2x4x8xf32>
    %50 = vector.extract_strided_slice %26 {offsets = [0, 0, 128], sizes = [2, 8, 128], strides = [1, 1, 1]} : vector<2x8x256xbf16> to vector<2x8x128xbf16>
    "tpu.trace_start"() <{level = 10 : i32, message = "bkh,blh->bkl"}> : () -> ()
    %cst_29 = arith.constant dense<0.000000e+00> : vector<2x4x8xf32>
    %51 = tpu.matmul %2, %50, %cst_29 {dimension_numbers = #tpu.dot_dimension_numbers<[2], [2], [1], [1], [0, 0, 0, 1, 1, 1], [0], [0]>} : vector<2x4x128xbf16>, vector<2x8x128xbf16>, vector<2x4x8xf32> -> vector<2x4x8xf32>
    "tpu.trace_stop"() : () -> ()
    %52 = tpu.iota {dimensions = array<i32: 2>} : vector<2x4x8xi32>
    %53 = vector.broadcast %5 : vector<2x1x1xi32> to vector<2x4x8xi32>
    %54 = arith.cmpi slt, %52, %53 : vector<2x4x8xi32>
    %cst_30 = arith.constant -1.000000e+02 : f32
    %55 = vector.broadcast %cst_30 : f32 to vector<2x4x8xf32>
    %56 = arith.select %54, %51, %55 : vector<2x4x8xi1>, vector<2x4x8xf32>
    %cst_31 = arith.constant dense<0xFF800000> : vector<2x4xf32>
    %57 = vector.multi_reduction <maximumf>, %56, %cst_31 [2] : vector<2x4x8xf32> to vector<2x4xf32>
    %58 = vector.shape_cast %57 : vector<2x4xf32> to vector<2x4x1xf32>
    %59 = vector.broadcast %58 : vector<2x4x1xf32> to vector<2x4x8xf32>
    %60 = arith.subf %56, %59 : vector<2x4x8xf32>
    %61 = math.exp %60 : vector<2x4x8xf32>
    %cst_32 = arith.constant dense<0.000000e+00> : vector<2x4xf32>
    %62 = vector.multi_reduction <add>, %61, %cst_32 [2] : vector<2x4x8xf32> to vector<2x4xf32>
    %63 = vector.shape_cast %62 : vector<2x4xf32> to vector<2x4x1xf32>
    %64 = tpu.reciprocal %63 {approx = true} : vector<2x4x1xf32> -> vector<2x4x1xf32>
    %65 = vector.broadcast %64 : vector<2x4x1xf32> to vector<2x4x8xf32>
    %66 = arith.mulf %61, %65 : vector<2x4x8xf32>
    %67 = vector.extract_strided_slice %32 {offsets = [0, 0, 0], sizes = [2, 6, 128], strides = [1, 1, 1]} : vector<2x6x256xbf16> to vector<2x6x128xbf16>
    "tpu.trace_start"() <{level = 10 : i32, message = "bkh,blh->bkl"}> : () -> ()
    %cst_33 = arith.constant dense<0.000000e+00> : vector<2x4x6xf32>
    %68 = tpu.matmul %2, %67, %cst_33 {dimension_numbers = #tpu.dot_dimension_numbers<[2], [2], [1], [1], [0, 0, 0, 1, 1, 1], [0], [0]>} : vector<2x4x128xbf16>, vector<2x6x128xbf16>, vector<2x4x6xf32> -> vector<2x4x6xf32>
    "tpu.trace_stop"() : () -> ()
    %69 = tpu.iota {dimensions = array<i32: 2>} : vector<2x4x6xi32>
    %70 = vector.broadcast %7 : vector<2x1x1xi32> to vector<2x4x6xi32>
    %71 = arith.cmpi slt, %69, %70 : vector<2x4x6xi32>
    %cst_34 = arith.constant -1.000000e+02 : f32
    %72 = vector.broadcast %cst_34 : f32 to vector<2x4x6xf32>
    %73 = arith.select %71, %68, %72 : vector<2x4x6xi1>, vector<2x4x6xf32>
    %cst_35 = arith.constant dense<0xFF800000> : vector<2x4xf32>
    %74 = vector.multi_reduction <maximumf>, %73, %cst_35 [2] : vector<2x4x6xf32> to vector<2x4xf32>
    %75 = vector.shape_cast %74 : vector<2x4xf32> to vector<2x4x1xf32>
    %76 = vector.broadcast %75 : vector<2x4x1xf32> to vector<2x4x6xf32>
    %77 = arith.subf %73, %76 : vector<2x4x6xf32>
    %78 = math.exp %77 : vector<2x4x6xf32>
    %cst_36 = arith.constant dense<0.000000e+00> : vector<2x4xf32>
    %79 = vector.multi_reduction <add>, %78, %cst_36 [2] : vector<2x4x6xf32> to vector<2x4xf32>
    %80 = vector.shape_cast %79 : vector<2x4xf32> to vector<2x4x1xf32>
    %81 = tpu.reciprocal %80 {approx = true} : vector<2x4x1xf32> -> vector<2x4x1xf32>
    %82 = vector.broadcast %81 : vector<2x4x1xf32> to vector<2x4x6xf32>
    %83 = arith.mulf %78, %82 : vector<2x4x6xf32>
    %84 = vector.extract_strided_slice %32 {offsets = [0, 0, 128], sizes = [2, 6, 128], strides = [1, 1, 1]} : vector<2x6x256xbf16> to vector<2x6x128xbf16>
    "tpu.trace_start"() <{level = 10 : i32, message = "bkh,blh->bkl"}> : () -> ()
    %cst_37 = arith.constant dense<0.000000e+00> : vector<2x4x6xf32>
    %85 = tpu.matmul %2, %84, %cst_37 {dimension_numbers = #tpu.dot_dimension_numbers<[2], [2], [1], [1], [0, 0, 0, 1, 1, 1], [0], [0]>} : vector<2x4x128xbf16>, vector<2x6x128xbf16>, vector<2x4x6xf32> -> vector<2x4x6xf32>
    "tpu.trace_stop"() : () -> ()
    %86 = tpu.iota {dimensions = array<i32: 2>} : vector<2x4x6xi32>
    %87 = vector.broadcast %7 : vector<2x1x1xi32> to vector<2x4x6xi32>
    %88 = arith.cmpi slt, %86, %87 : vector<2x4x6xi32>
    %cst_38 = arith.constant -1.000000e+02 : f32
    %89 = vector.broadcast %cst_38 : f32 to vector<2x4x6xf32>
    %90 = arith.select %88, %85, %89 : vector<2x4x6xi1>, vector<2x4x6xf32>
    %cst_39 = arith.constant dense<0xFF800000> : vector<2x4xf32>
    %91 = vector.multi_reduction <maximumf>, %90, %cst_39 [2] : vector<2x4x6xf32> to vector<2x4xf32>
    %92 = vector.shape_cast %91 : vector<2x4xf32> to vector<2x4x1xf32>
    %93 = vector.broadcast %92 : vector<2x4x1xf32> to vector<2x4x6xf32>
    %94 = arith.subf %90, %93 : vector<2x4x6xf32>
    %95 = math.exp %94 : vector<2x4x6xf32>
    %cst_40 = arith.constant dense<0.000000e+00> : vector<2x4xf32>
    %96 = vector.multi_reduction <add>, %95, %cst_40 [2] : vector<2x4x6xf32> to vector<2x4xf32>
    %97 = vector.shape_cast %96 : vector<2x4xf32> to vector<2x4x1xf32>
    %98 = tpu.reciprocal %97 {approx = true} : vector<2x4x1xf32> -> vector<2x4x1xf32>
    %99 = vector.broadcast %98 : vector<2x4x1xf32> to vector<2x4x6xf32>
    %100 = arith.mulf %95, %99 : vector<2x4x6xf32>
    %cst_41 = arith.constant dense<0.000000e+00> : vector<2x8xf32>
    %101 = vector.multi_reduction <add>, %49, %cst_41 [1] : vector<2x4x8xf32> to vector<2x8xf32>
    %102 = vector.shape_cast %101 : vector<2x8xf32> to vector<2x1x8xf32>
    %103 = tpu.concatenate %102, %66 in 1 : vector<2x1x8xf32>, vector<2x4x8xf32> -> vector<2x5x8xf32>
    %104 = arith.truncf %103 : vector<2x5x8xf32> to vector<2x5x8xbf16>
    "tpu.trace_start"() <{level = 10 : i32, message = "bkl,blh->bkh"}> : () -> ()
    %cst_42 = arith.constant dense<0.000000e+00> : vector<2x5x128xf32>
    %105 = tpu.matmul %104, %0, %cst_42 {dimension_numbers = #tpu.dot_dimension_numbers<[2], [1], [1], [2], [0, 0, 0, 1, 1, 2], [0], [0]>} : vector<2x5x8xbf16>, vector<2x8x128xbf16>, vector<2x5x128xf32> -> vector<2x5x128xf32>
    "tpu.trace_stop"() : () -> ()
    %106 = vector.extract_strided_slice %105 {offsets = [0, 0, 0], sizes = [2, 1, 128], strides = [1, 1, 1]} : vector<2x5x128xf32> to vector<2x1x128xf32>
    %107 = vector.shape_cast %106 : vector<2x1x128xf32> to vector<2x128xf32>
    %108 = vector.extract_strided_slice %105 {offsets = [0, 1, 0], sizes = [2, 4, 128], strides = [1, 1, 1]} : vector<2x5x128xf32> to vector<2x4x128xf32>
    %cst_43 = arith.constant dense<0.000000e+00> : vector<2x6xf32>
    %109 = vector.multi_reduction <add>, %83, %cst_43 [1] : vector<2x4x6xf32> to vector<2x6xf32>
    %110 = vector.shape_cast %109 : vector<2x6xf32> to vector<2x1x6xf32>
    %111 = tpu.concatenate %110, %100 in 1 : vector<2x1x6xf32>, vector<2x4x6xf32> -> vector<2x5x6xf32>
    %112 = arith.truncf %111 : vector<2x5x6xf32> to vector<2x5x6xbf16>
    "tpu.trace_start"() <{level = 10 : i32, message = "bkl,blh->bkh"}> : () -> ()
    %cst_44 = arith.constant dense<0.000000e+00> : vector<2x5x128xf32>
    %113 = tpu.matmul %112, %1, %cst_44 {dimension_numbers = #tpu.dot_dimension_numbers<[2], [1], [1], [2], [0, 0, 0, 1, 1, 2], [0], [0]>} : vector<2x5x6xbf16>, vector<2x6x128xbf16>, vector<2x5x128xf32> -> vector<2x5x128xf32>
    "tpu.trace_stop"() : () -> ()
    %114 = vector.extract_strided_slice %113 {offsets = [0, 0, 0], sizes = [2, 1, 128], strides = [1, 1, 1]} : vector<2x5x128xf32> to vector<2x1x128xf32>
    %115 = vector.shape_cast %114 : vector<2x1x128xf32> to vector<2x128xf32>
    %116 = vector.extract_strided_slice %113 {offsets = [0, 1, 0], sizes = [2, 4, 128], strides = [1, 1, 1]} : vector<2x5x128xf32> to vector<2x4x128xf32>
    %117 = tpu.concatenate %107, %115 in 1 : vector<2x128xf32>, vector<2x128xf32> -> vector<2x256xf32>
    %118 = arith.truncf %117 : vector<2x256xf32> to vector<2x256xbf16>
    %cst_45 = arith.constant dense<0.000000e+00> : vector<2x128xf32>
    %119 = tpu.matmul %118, %10, %cst_45 {dimension_numbers = #tpu.dot_dimension_numbers<[1], [0], [0], [1], [0, 0, 1, 1], [], []>} : vector<2x256xbf16>, vector<256x128xbf16>, vector<2x128xf32> -> vector<2x128xf32>
    %120 = vector.broadcast %15 : vector<1x128xf32> to vector<2x128xf32>
    %121 = arith.addf %119, %120 : vector<2x128xf32>
    %122 = math.tanh %121 : vector<2x128xf32>
    %123 = arith.truncf %122 : vector<2x128xf32> to vector<2x128xbf16>
    %cst_46 = arith.constant dense<0.000000e+00> : vector<2x128xf32>
    %124 = tpu.matmul %123, %12, %cst_46 {dimension_numbers = #tpu.dot_dimension_numbers<[1], [0], [0], [1], [0, 0, 1, 1], [], []>} : vector<2x128xbf16>, vector<128x128xbf16>, vector<2x128xf32> -> vector<2x128xf32>
    %125 = vector.broadcast %19 : vector<1x128xf32> to vector<2x128xf32>
    %126 = arith.addf %124, %125 : vector<2x128xf32>
    %127 = arith.truncf %108 : vector<2x4x128xf32> to vector<2x4x128xbf16>
    %128 = arith.truncf %116 : vector<2x4x128xf32> to vector<2x4x128xbf16>
    %129 = tpu.concatenate %127, %128, %2 in 2 : vector<2x4x128xbf16>, vector<2x4x128xbf16>, vector<2x4x128xbf16> -> vector<2x4x384xbf16>
    %130 = vector.shape_cast %129 : vector<2x4x384xbf16> to vector<8x384xbf16>
    %cst_47 = arith.constant dense<0.000000e+00> : vector<8x128xf32>
    %131 = tpu.matmul %130, %11, %cst_47 {dimension_numbers = #tpu.dot_dimension_numbers<[1], [0], [0], [1], [0, 0, 1, 1], [], []>} : vector<8x384xbf16>, vector<384x128xbf16>, vector<8x128xf32> -> vector<8x128xf32>
    %132 = vector.broadcast %16 : vector<1x128xf32> to vector<8x128xf32>
    %133 = arith.addf %131, %132 : vector<8x128xf32>
    %134 = vector.shape_cast %133 : vector<8x128xf32> to vector<2x4x128xf32>
    %135 = math.tanh %134 : vector<2x4x128xf32>
    %136 = vector.broadcast %18 : vector<1x1x128xf32> to vector<2x4x128xf32>
    %137 = arith.mulf %135, %136 : vector<2x4x128xf32>
    %cst_48 = arith.constant dense<0.000000e+00> : vector<2x4xf32>
    %138 = vector.multi_reduction <add>, %137, %cst_48 [2] : vector<2x4x128xf32> to vector<2x4xf32>
    %139 = vector.broadcast %20 : vector<1x1xf32> to vector<2x4xf32>
    %140 = arith.addf %138, %139 : vector<2x4xf32>
    %141 = vector.extract_strided_slice %126 {offsets = [0, 0], sizes = [2, 4], strides = [1, 1]} : vector<2x128xf32> to vector<2x4xf32>
    %cst_49 = arith.constant 0.000000e+00 : f32
    %142 = vector.broadcast %cst_49 : f32 to vector<2x120xf32>
    %143 = tpu.concatenate %141, %140, %142 in 1 : vector<2x4xf32>, vector<2x4xf32>, vector<2x120xf32> -> vector<2x128xf32>
    %c0_50 = arith.constant 0 : index
    %c0_51 = arith.constant 0 : index
    %144 = vector.load %arg7[%c0_50, %c0_51] : memref<2x128xf32, #tpu.memory_space<vmem>>, vector<2x128xf32>
    tpu.vector_store %arg7[%c0_50, %c0_51], %143 {strides = array<i32>} : memref<2x128xf32, #tpu.memory_space<vmem>>, vector<2x128xf32>,
    return
  }
  func.func @transform_0(%arg0: i32) -> (i32, i32, i32) {
    %c0_i32 = arith.constant 0 : i32
    %c0_i32_0 = arith.constant 0 : i32
    %c0_i32_1 = arith.constant 0 : i32
    return %arg0, %c0_i32, %c0_i32_0 : i32, i32, i32
  }
  func.func @transform_1(%arg0: i32) -> (i32, i32, i32) {
    %c0_i32 = arith.constant 0 : i32
    %c0_i32_0 = arith.constant 0 : i32
    %c0_i32_1 = arith.constant 0 : i32
    return %arg0, %c0_i32, %c0_i32_0 : i32, i32, i32
  }
  func.func @transform_2(%arg0: i32) -> (i32, i32, i32) {
    %c0_i32 = arith.constant 0 : i32
    %c0_i32_0 = arith.constant 0 : i32
    %c0_i32_1 = arith.constant 0 : i32
    return %arg0, %c0_i32, %c0_i32_0 : i32, i32, i32
  }
  func.func @transform_3(%arg0: i32) -> (i32, i32) {
    %c0_i32 = arith.constant 0 : i32
    %c0_i32_0 = arith.constant 0 : i32
    return %arg0, %c0_i32 : i32, i32
  }
  func.func @transform_4(%arg0: i32) -> (i32, i32) {
    %c0_i32 = arith.constant 0 : i32
    %c0_i32_0 = arith.constant 0 : i32
    %c0_i32_1 = arith.constant 0 : i32
    return %c0_i32, %c0_i32_0 : i32, i32
  }
  func.func @transform_5(%arg0: i32) -> (i32, i32) {
    %c0_i32 = arith.constant 0 : i32
    %c0_i32_0 = arith.constant 0 : i32
    %c0_i32_1 = arith.constant 0 : i32
    return %c0_i32, %c0_i32_0 : i32, i32
  }
  func.func @transform_6(%arg0: i32) -> (i32, i32) {
    %c0_i32 = arith.constant 0 : i32
    %c0_i32_0 = arith.constant 0 : i32
    return %arg0, %c0_i32 : i32, i32
  }
}

</mosaic_0001>

<llo_original>
// kernel: tpu_custom_call.1
$region0: #{tpu_custom_call.1}
  #allocation0 [shape = 'u32[]', space=smem, size = 0x4, offset = 0x4, fixed_abs, tag = 'smem constant byte address 0x4 - core index']
  #allocation1 [shape = 'u32[144,128]{1,0:T(1,128)}', space=vmem, size = 0x12000, scoped, tag = 'internal scratch']
  %s0 = inlined_call_operand.vmem [shape: bf16[2,8,128], index: 0, kind: input, shape index: {}]
  %s1 = inlined_call_operand.vmem [shape: bf16[2,6,128], index: 1, kind: input, shape index: {}]
  %s2 = inlined_call_operand.vmem [shape: bf16[2,4,128], index: 2, kind: input, shape index: {}]
  %s3 = inlined_call_operand.vmem [shape: s32[2,2], index: 3, kind: input, shape index: {}]
  %s4 = inlined_call_operand.hbm [shape: bf16[1024,256], index: 4, kind: input, shape index: {}]
  %s5 = inlined_call_operand.vmem [shape: f32[8,256], index: 5, kind: input, shape index: {}]
  %s6 = inlined_call_operand.hbm [shape: f32[2,128], index: 6, kind: output, shape index: {}]
  %s7 = sld [smem:[#allocation0]]
  $region38: #{tpu_custom_call.1} parent=0
    _
  %s9 = ssub.s32 1, %s7
  %s10 = scalar_select 0, %s9, %s7
  $region1: #{tpu_custom_call.1} parent=0
    #allocation2 [shape = 'u8[524288]{0}', space=vmem, size = 0x80000, scoped, tag = 'input window, operand 4, single buffered']
    #allocation3 [shape = 's32[1]{0}', space=sflag, size = 0x4, scoped, tag = 'scoped memory for tpu_custom_call.1']
    #allocation4 [shape = 's32[1]{0}', space=sflag, size = 0x4, scoped, tag = 'scoped memory for tpu_custom_call.1']
    #allocation5 [shape = 'u8[1024]{0}', space=vmem, size = 0x400, scoped, tag = 'output window, operand 0, single buffered']
    %11 = vsyncpa [#allocation3], 0
    %12 = vsyncpa [#allocation4], 0
    // Predicated region
    $region2: #{tpu_custom_call.1} parent=1 // pred_check
      _
    $region3: #{tpu_custom_call.1} parent=1 // pred_check_branch
      %14 = sbr.rel (0) target = $region5
    $region4: #{tpu_custom_call.1} parent=1 // pred_region
      _
    $region5: #{tpu_custom_call.1} parent=1 // pred_fallthru
      _
    // Predicated region
    $region6: #{tpu_custom_call.1} parent=1 // pred_check
      _
    $region7: #{tpu_custom_call.1} parent=1 // pred_check_branch
      %16 = sbr.rel (0) target = $region9
    $region8: #{tpu_custom_call.1} parent=1 // pred_region
      _
    $region9: #{tpu_custom_call.1} parent=1 // pred_fallthru
      _
    // Predicated region
    $region10: #{tpu_custom_call.1} parent=1 // pred_check
      _
    $region11: #{tpu_custom_call.1} parent=1 // pred_check_branch
      %18 = sbr.rel (0) target = $region13
    $region12: #{tpu_custom_call.1} parent=1 // pred_region
      _
    $region13: #{tpu_custom_call.1} parent=1 // pred_fallthru
      _
    // Predicated region
    $region14: #{tpu_custom_call.1} parent=1 // pred_check
      _
    $region15: #{tpu_custom_call.1} parent=1 // pred_check_branch
      %20 = sbr.rel (0) target = $region17
    $region16: #{tpu_custom_call.1} parent=1 // pred_region
      _
    $region17: #{tpu_custom_call.1} parent=1 // pred_fallthru
      _
    // Predicated region
    $region18: #{tpu_custom_call.1} parent=1 // pred_check
      _
    $region19: #{tpu_custom_call.1} parent=1 // pred_check_branch
      %22 = sbr.rel (0) target = $region21
    $region20: #{tpu_custom_call.1} parent=1 // pred_region
      %s24 = ssub.s32 16384, 16384
      %25 = vsyncadd [#allocation3], %s24
      %s26 = sshll.u32 [#allocation2], 4
      %s27 = int_to_ptr.vmem [resolvable:$true] %s26
      %32 = dma.hbm_to_vmem [thread:$0]  %s4, 16384, %s27, [#allocation3], 128, 128, 8
    $region21: #{tpu_custom_call.1} parent=1 // pred_fallthru
      _
    // Predicated region
    $region22: #{tpu_custom_call.1} parent=1 // pred_check
      _
    $region23: #{tpu_custom_call.1} parent=1 // pred_check_branch
      %34 = sbr.rel (0) target = $region25
    $region24: #{tpu_custom_call.1} parent=1 // pred_region
      _
    $region25: #{tpu_custom_call.1} parent=1 // pred_fallthru
      _
    // Predicated region
    $region26: #{tpu_custom_call.1} parent=1 // pred_check
      _
    $region27: #{tpu_custom_call.1} parent=1 // pred_check_branch
      %36 = sbr.rel (0) target = $region29
    $region28: #{tpu_custom_call.1} parent=1 // pred_region
      %37 = dma.done [#allocation3], 16384
    $region29: #{tpu_custom_call.1} parent=1 // pred_fallthru
      _
    %v39 = vld [vmem:[%s0] sm:$0xf]
    %v40 = vld [vmem:[%s0 + $0x4] sm:$0xf]
    %v41 = vld [vmem:[%s1] sm:$0x7]
    %v42 = vld [vmem:[%s1 + $0x4] sm:$0x7]
    %v43 = vld [vmem:[%s2] sm:$0x3]
    %v44 = vld [vmem:[%s2 + $0x2] sm:$0x3]
    %v45 = vld [vmem:[%s3] sm:$0x3]
    %v47 = vunpack.c.l.s4 1966171168
    %v48 = vunpack.c.0.s8 %v47
    %v49 = vlaneseq
    %v50 = vshrl.u32 %v49, 7
    %v51 = vsub.s32 %v48, %v50
    %v52 = vrot.slane %v45, %v51
    %v53 = vcombine.high %v52, %v52
    %v55 = vunpack.c.l.s4 1966171168
    %v56 = vunpack.c.0.s8 %v55
    %v57 = vlaneseq
    %v58 = vshrl.u32 %v57, 7
    %v59 = vsub.s32 %v56, %v58
    %v60 = vrot.slane %v52, %v59
    %v62 = vunpack.c.l.s4 1966171168
    %v63 = vunpack.c.0.s8 %v62
    %v64 = vlaneseq
    %v65 = vshrl.u32 %v64, 7
    %v66 = vsub.s32 %v63, %v65
    %v67 = vrot.slane %v53, %v66
    %v68 = vld [vmem:[#allocation2] sm:$0xff]
    %v69 = vld [vmem:[#allocation2 + $0x8] sm:$0xff]
    %v70 = vld [vmem:[#allocation2 + $0x10] sm:$0xff]
    %v71 = vld [vmem:[#allocation2 + $0x18] sm:$0xff]
    %v72 = vld [vmem:[#allocation2 + $0x20] sm:$0xff]
    %v73 = vld [vmem:[#allocation2 + $0x28] sm:$0xff]
    %v74 = vld [vmem:[#allocation2 + $0x30] sm:$0xff]
    %v75 = vld [vmem:[#allocation2 + $0x38] sm:$0xff]
    %v76 = vld [vmem:[#allocation2 + $0x40] sm:$0xff]
    %v77 = vld [vmem:[#allocation2 + $0x48] sm:$0xff]
    %v78 = vld [vmem:[#allocation2 + $0x50] sm:$0xff]
    %v79 = vld [vmem:[#allocation2 + $0x58] sm:$0xff]
    %v80 = vld [vmem:[#allocation2 + $0x60] sm:$0xff]
    %v81 = vld [vmem:[#allocation2 + $0x68] sm:$0xff]
    %v82 = vld [vmem:[#allocation2 + $0x70] sm:$0xff]
    %v83 = vld [vmem:[#allocation2 + $0x78] sm:$0xff]
    %v84 = vld [vmem:[#allocation2 + $0x80] sm:$0xff]
    %v85 = vld [vmem:[#allocation2 + $0x88] sm:$0xff]
    %v86 = vld [vmem:[#allocation2 + $0x90] sm:$0xff]
    %v87 = vld [vmem:[#allocation2 + $0x98] sm:$0xff]
    %v88 = vld [vmem:[#allocation2 + $0xa0] sm:$0xff]
    %v89 = vld [vmem:[#allocation2 + $0xa8] sm:$0xff]
    %v90 = vld [vmem:[#allocation2 + $0xb0] sm:$0xff]
    %v91 = vld [vmem:[#allocation2 + $0xb8] sm:$0xff]
    %v92 = vld [vmem:[#allocation2 + $0xc0] sm:$0xff]
    %v93 = vld [vmem:[#allocation2 + $0xc8] sm:$0xff]
    %v94 = vld [vmem:[#allocation2 + $0xd0] sm:$0xff]
    %v95 = vld [vmem:[#allocation2 + $0xd8] sm:$0xff]
    %v96 = vld [vmem:[#allocation2 + $0xe0] sm:$0xff]
    %v97 = vld [vmem:[#allocation2 + $0xe8] sm:$0xff]
    %v98 = vld [vmem:[#allocation2 + $0xf0] sm:$0xff]
    %v99 = vld [vmem:[#allocation2 + $0xf8] sm:$0xff]
    %v100 = vld [vmem:[#allocation2 + $0x100] sm:$0xf]
    %v101 = vld [vmem:[#allocation2 + $0x108] sm:$0xf]
    %v102 = vld [vmem:[#allocation2 + $0x110] sm:$0xf]
    %v103 = vld [vmem:[#allocation2 + $0x118] sm:$0xf]
    %v104 = vld [vmem:[#allocation2 + $0x120] sm:$0xf]
    %v105 = vld [vmem:[#allocation2 + $0x128] sm:$0xf]
    %v106 = vld [vmem:[#allocation2 + $0x130] sm:$0xf]
    %v107 = vld [vmem:[#allocation2 + $0x138] sm:$0xf]
    %v108 = vld [vmem:[#allocation2 + $0x140] sm:$0xf]
    %v109 = vld [vmem:[#allocation2 + $0x148] sm:$0xf]
    %v110 = vld [vmem:[#allocation2 + $0x150] sm:$0xf]
    %v111 = vld [vmem:[#allocation2 + $0x158] sm:$0xf]
    %v112 = vld [vmem:[#allocation2 + $0x160] sm:$0xf]
    %v113 = vld [vmem:[#allocation2 + $0x168] sm:$0xf]
    %v114 = vld [vmem:[#allocation2 + $0x170] sm:$0xf]
    %v115 = vld [vmem:[#allocation2 + $0x178] sm:$0xf]
    %v116 = vld [vmem:[#allocation2 + $0x180] sm:$0xf]
    %v117 = vld [vmem:[#allocation2 + $0x188] sm:$0xf]
    %v118 = vld [vmem:[#allocation2 + $0x190] sm:$0xf]
    %v119 = vld [vmem:[#allocation2 + $0x198] sm:$0xf]
    %v120 = vld [vmem:[#allocation2 + $0x1a0] sm:$0xf]
    %v121 = vld [vmem:[#allocation2 + $0x1a8] sm:$0xf]
    %v122 = vld [vmem:[#allocation2 + $0x1b0] sm:$0xf]
    %v123 = vld [vmem:[#allocation2 + $0x1b8] sm:$0xf]
    %v124 = vld [vmem:[#allocation2 + $0x1c0] sm:$0xf]
    %v125 = vld [vmem:[#allocation2 + $0x1c8] sm:$0xf]
    %v126 = vld [vmem:[#allocation2 + $0x1d0] sm:$0xf]
    %v127 = vld [vmem:[#allocation2 + $0x1d8] sm:$0xf]
    %v128 = vld [vmem:[#allocation2 + $0x1e0] sm:$0xf]
    %v129 = vld [vmem:[#allocation2 + $0x1e8] sm:$0xf]
    %v130 = vld [vmem:[#allocation2 + $0x1f0] sm:$0xf]
    %v131 = vld [vmem:[#allocation2 + $0x1f8] sm:$0xf]
    %v132 = vld [vmem:[#allocation2 + $0x200] sm:$0xf]
    %v133 = vld [vmem:[#allocation2 + $0x208] sm:$0xf]
    %v134 = vld [vmem:[#allocation2 + $0x210] sm:$0xf]
    %v135 = vld [vmem:[#allocation2 + $0x218] sm:$0xf]
    %v136 = vld [vmem:[#allocation2 + $0x220] sm:$0xf]
    %v137 = vld [vmem:[#allocation2 + $0x228] sm:$0xf]
    %v138 = vld [vmem:[#allocation2 + $0x230] sm:$0xf]
    %v139 = vld [vmem:[#allocation2 + $0x238] sm:$0xf]
    %v140 = vld [vmem:[#allocation2 + $0x240] sm:$0xf]
    %v141 = vld [vmem:[#allocation2 + $0x248] sm:$0xf]
    %v142 = vld [vmem:[#allocation2 + $0x250] sm:$0xf]
    %v143 = vld [vmem:[#allocation2 + $0x258] sm:$0xf]
    %v144 = vld [vmem:[#allocation2 + $0x260] sm:$0xf]
    %v145 = vld [vmem:[#allocation2 + $0x268] sm:$0xf]
    %v146 = vld [vmem:[#allocation2 + $0x270] sm:$0xf]
    %v147 = vld [vmem:[#allocation2 + $0x278] sm:$0xf]
    %v148 = vld [vmem:[#allocation2 + $0x280] sm:$0xf]
    %v149 = vld [vmem:[#allocation2 + $0x288] sm:$0xf]
    %v150 = vld [vmem:[#allocation2 + $0x290] sm:$0xf]
    %v151 = vld [vmem:[#allocation2 + $0x298] sm:$0xf]
    %v152 = vld [vmem:[#allocation2 + $0x2a0] sm:$0xf]
    %v153 = vld [vmem:[#allocation2 + $0x2a8] sm:$0xf]
    %v154 = vld [vmem:[#allocation2 + $0x2b0] sm:$0xf]
    %v155 = vld [vmem:[#allocation2 + $0x2b8] sm:$0xf]
    %v156 = vld [vmem:[#allocation2 + $0x2c0] sm:$0xf]
    %v157 = vld [vmem:[#allocation2 + $0x2c8] sm:$0xf]
    %v158 = vld [vmem:[#allocation2 + $0x2d0] sm:$0xf]
    %v159 = vld [vmem:[#allocation2 + $0x2d8] sm:$0xf]
    %v160 = vld [vmem:[#allocation2 + $0x2e0] sm:$0xf]
    %v161 = vld [vmem:[#allocation2 + $0x2e8] sm:$0xf]
    %v162 = vld [vmem:[#allocation2 + $0x2f0] sm:$0xf]
    %v163 = vld [vmem:[#allocation2 + $0x2f8] sm:$0xf]
    %v164 = vld [vmem:[#allocation2 + $0x300] sm:$0xf]
    %v165 = vld [vmem:[#allocation2 + $0x308] sm:$0xf]
    %v166 = vld [vmem:[#allocation2 + $0x310] sm:$0xf]
    %v167 = vld [vmem:[#allocation2 + $0x318] sm:$0xf]
    %v168 = vld [vmem:[#allocation2 + $0x320] sm:$0xf]
    %v169 = vld [vmem:[#allocation2 + $0x328] sm:$0xf]
    %v170 = vld [vmem:[#allocation2 + $0x330] sm:$0xf]
    %v171 = vld [vmem:[#allocation2 + $0x338] sm:$0xf]
    %v172 = vld [vmem:[#allocation2 + $0x340] sm:$0xf]
    %v173 = vld [vmem:[#allocation2 + $0x348] sm:$0xf]
    %v174 = vld [vmem:[#allocation2 + $0x350] sm:$0xf]
    %v175 = vld [vmem:[#allocation2 + $0x358] sm:$0xf]
    %v176 = vld [vmem:[#allocation2 + $0x360] sm:$0xf]
    %v177 = vld [vmem:[#allocation2 + $0x368] sm:$0xf]
    %v178 = vld [vmem:[#allocation2 + $0x370] sm:$0xf]
    %v179 = vld [vmem:[#allocation2 + $0x378] sm:$0xf]
    %v180 = vld [vmem:[#allocation2 + $0x380] sm:$0xf]
    %v181 = vld [vmem:[#allocation2 + $0x388] sm:$0xf]
    %v182 = vld [vmem:[#allocation2 + $0x390] sm:$0xf]
    %v183 = vld [vmem:[#allocation2 + $0x398] sm:$0xf]
    %v184 = vld [vmem:[#allocation2 + $0x3a0] sm:$0xf]
    %v185 = vld [vmem:[#allocation2 + $0x3a8] sm:$0xf]
    %v186 = vld [vmem:[#allocation2 + $0x3b0] sm:$0xf]
    %v187 = vld [vmem:[#allocation2 + $0x3b8] sm:$0xf]
    %v188 = vld [vmem:[#allocation2 + $0x3c0] sm:$0xf]
    %v189 = vld [vmem:[#allocation2 + $0x3c8] sm:$0xf]
    %v190 = vld [vmem:[#allocation2 + $0x3d0] sm:$0xf]
    %v191 = vld [vmem:[#allocation2 + $0x3d8] sm:$0xf]
    %v192 = vld [vmem:[#allocation2 + $0x3e0] sm:$0xf]
    %v193 = vld [vmem:[#allocation2 + $0x3e8] sm:$0xf]
    %v194 = vld [vmem:[#allocation2 + $0x3f0] sm:$0xf]
    %v195 = vld [vmem:[#allocation2 + $0x3f8] sm:$0xf]
    %v196 = vld [vmem:[%s5] ss:$8 sm:$0x3]
    %s197 = scalar_lea.vmem %s5, 1
    %v198 = vld [vmem:[%s197] ss:$8 sm:$0x3]
    %v199 = vld [vmem:[%s5 + $0x2] ss:$0 sm:$0xff]
    %v200 = vld [vmem:[%s5 + $0x3] ss:$0 sm:$0xff]
    %v201 = vld [vmem:[%s5 + $0x4] ss:$0 sm:$0xff]
    %v202 = vld [vmem:[%s5 + $0x5] ss:$0 sm:$0xff]
    %v203 = vld [vmem:[%s5 + $0x6] ss:$0 sm:$0xff]
    %v205 = vlaneseq
    %v206 = vshrl.u32 %v205, 7
    %v207 = vsub.s32 0, %v206
    %v208 = vrot.slane %v196, %v207
    %v209 = vlaneseq
    %v210 = vshrl.u32 %v209, 7
    %v211 = vsub.s32 1, %v210
    %v212 = vrot.slane %v196, %v211
    %v217 = vunpack.c.l.b16 %v39
    %v218 = vunpack.c.l.b16 %v40
    %v219 = vpack.c.b16 %v218, %v217
    %v237 = vunpack.c.l.b16 %v68
    %v238 = vunpack.c.h.b16 %v68
    %v239 = vunpack.c.l.b16 %v69
    %v240 = vunpack.c.h.b16 %v69
    %v241 = vunpack.c.l.b16 %v70
    %v242 = vunpack.c.h.b16 %v70
    %v243 = vunpack.c.l.b16 %v71
    %v244 = vunpack.c.h.b16 %v71
    %v245 = vunpack.c.l.b16 %v72
    %v246 = vunpack.c.h.b16 %v72
    %v247 = vunpack.c.l.b16 %v73
    %v248 = vunpack.c.h.b16 %v73
    %v249 = vunpack.c.l.b16 %v74
    %v250 = vunpack.c.h.b16 %v74
    %v251 = vunpack.c.l.b16 %v75
    %v252 = vunpack.c.h.b16 %v75
    %v253 = vunpack.c.l.b16 %v76
    %v254 = vunpack.c.h.b16 %v76
    %v255 = vunpack.c.l.b16 %v77
    %v256 = vunpack.c.h.b16 %v77
    %v257 = vunpack.c.l.b16 %v78
    %v258 = vunpack.c.h.b16 %v78
    %v259 = vunpack.c.l.b16 %v79
    %v260 = vunpack.c.h.b16 %v79
    %v261 = vunpack.c.l.b16 %v80
    %v262 = vunpack.c.h.b16 %v80
    %v263 = vunpack.c.l.b16 %v81
    %v264 = vunpack.c.h.b16 %v81
    %v265 = vunpack.c.l.b16 %v82
    %v266 = vunpack.c.h.b16 %v82
    %v267 = vunpack.c.l.b16 %v83
    %v268 = vunpack.c.h.b16 %v83
    %v269 = vpack.c.b16 %v239, %v237
    %v270 = vpack.c.b16 %v240, %v238
    %v271 = vpack.c.b16 %v243, %v241
    %v272 = vpack.c.b16 %v244, %v242
    %v273 = vpack.c.b16 %v247, %v245
    %v274 = vpack.c.b16 %v248, %v246
    %v275 = vpack.c.b16 %v251, %v249
    %v276 = vpack.c.b16 %v252, %v250
    %v277 = vpack.c.b16 %v255, %v253
    %v278 = vpack.c.b16 %v256, %v254
    %v279 = vpack.c.b16 %v259, %v257
    %v280 = vpack.c.b16 %v260, %v258
    %v281 = vpack.c.b16 %v263, %v261
    %v282 = vpack.c.b16 %v264, %v262
    %v283 = vpack.c.b16 %v267, %v265
    %v284 = vpack.c.b16 %v268, %v266
    %301 = vmatprep.subr.bf16.mxu0 %v270
    %302 = vmatpush1.bf16.msra.mxu0 %v269
    %303 = vmatprep.subr.bf16.mxu0 %v272
    %304 = vmatpush1.bf16.msra.mxu0 %v271
    %305 = vmatprep.subr.bf16.mxu0 %v274
    %306 = vmatpush1.bf16.msra.mxu0 %v273
    %307 = vmatprep.subr.bf16.mxu0 %v276
    %308 = vmatpush1.bf16.msra.mxu0 %v275
    %309 = vmatprep.subr.bf16.mxu0 %v278
    %310 = vmatpush1.bf16.msra.mxu0 %v277
    %311 = vmatprep.subr.bf16.mxu0 %v280
    %312 = vmatpush1.bf16.msra.mxu0 %v279
    %313 = vmatprep.subr.bf16.mxu0 %v282
    %314 = vmatpush1.bf16.msra.mxu0 %v281
    %315 = vmatprep.subr.bf16.mxu0 %v284
    %316 = vmatpush1.bf16.msra.mxu0 %v283
    %317 = vmatprep.subr.bf16.mxu0 0
    %318 = vmatpush1.bf16.msra.mxu0 0
    %319 = vmatprep.subr.bf16.mxu0 0
    %320 = vmatpush1.bf16.msra.mxu0 0
    %321 = vmatprep.subr.bf16.mxu0 0
    %322 = vmatpush1.bf16.msra.mxu0 0
    %323 = vmatprep.subr.bf16.mxu0 0
    %324 = vmatpush1.bf16.msra.mxu0 0
    %325 = vmatprep.subr.bf16.mxu0 0
    %326 = vmatpush1.bf16.msra.mxu0 0
    %327 = vmatprep.subr.bf16.mxu0 0
    %328 = vmatpush1.bf16.msra.mxu0 0
    %329 = vmatprep.subr.bf16.mxu0 0
    %330 = vmatpush1.bf16.msra.mxu0 0
    %331 = vmatprep.subr.bf16.mxu0 0
    %332 = vmatpush1.bf16.msra.mxu0 0
    %333 = vmatprep.mubr.bf16.mxu0 0
    %334 = vmatmul.mubr.bf16.gmra.mrb[0].mxu0 %v219
    %v335 = vpop.f32.mrb[0].mxu0
    %v336 = vadd.f32 %v208, %v335
    %v337 = vpop.f32.mrb[0].mxu0
    %v338 = vadd.f32 %v212, %v337
    %v339 = vpop.f32.mrb[0].mxu0
    %v340 = vadd.f32 %v208, %v339
    %v341 = vpop.f32.mrb[0].mxu0
    %v342 = vadd.f32 %v212, %v341
    %343 = vdwg.mxu0
    %v344 = vpack.c.bf16 %v336, %v336
    %v345 = vpack.c.bf16 %v338, %v338
    %v346 = vpack.c.bf16 %v340, %v340
    %v347 = vpack.c.bf16 %v342, %v342
    %v351 = vunpack.c.l.s4 1966171168
    %v352 = vunpack.c.0.s8 %v351
    %v353 = vlaneseq
    %v354 = vshrl.u32 %v353, 7
    %v355 = vsub.s32 %v352, %v354
    %v356 = vrot.slane %v41, %v355
    %v357 = vcombine.high %v356, %v356
    %v359 = vunpack.c.l.s4 1966171168
    %v360 = vunpack.c.0.s8 %v359
    %v361 = vlaneseq
    %v362 = vshrl.u32 %v361, 7
    %v363 = vsub.s32 %v360, %v362
    %v364 = vrot.slane %v356, %v363
    %v366 = vunpack.c.l.s4 1966171168
    %v367 = vunpack.c.0.s8 %v366
    %v368 = vlaneseq
    %v369 = vshrl.u32 %v368, 7
    %v370 = vsub.s32 %v367, %v369
    %v371 = vrot.slane %v357, %v370
    %v372 = vcombine.high %v364, %v364
    %v374 = vunpack.c.l.s4 1966171168
    %v375 = vunpack.c.0.s8 %v374
    %v376 = vlaneseq
    %v377 = vshrl.u32 %v376, 7
    %v378 = vsub.s32 %v375, %v377
    %v379 = vrot.slane %v42, %v378
    %v380 = vcombine.high %v379, %v379
    %v382 = vunpack.c.l.s4 1966171168
    %v383 = vunpack.c.0.s8 %v382
    %v384 = vlaneseq
    %v385 = vshrl.u32 %v384, 7
    %v386 = vsub.s32 %v383, %v385
    %v387 = vrot.slane %v379, %v386
    %v389 = vunpack.c.l.s4 1966171168
    %v390 = vunpack.c.0.s8 %v389
    %v391 = vlaneseq
    %v392 = vshrl.u32 %v391, 7
    %v393 = vsub.s32 %v390, %v392
    %v394 = vrot.slane %v380, %v393
    %v395 = vcombine.high %v387, %v387
    %v397 = vlaneseq
    %v398 = vshrl.u32 %v397, 7
    %v399 = vsub.s32 0, %v398
    %v400 = vrot.slane %v198, %v399
    %v401 = vlaneseq
    %v402 = vshrl.u32 %v401, 7
    %v403 = vsub.s32 1, %v402
    %v404 = vrot.slane %v198, %v403
    %v407 = vcombine.low %v364, %v371
    %v408 = vcombine.low %v372, %v387
    %v409 = vcombine.low %v394, %v395
    %v411 = vunpack.c.l.s4 1966171168
    %v412 = vunpack.c.0.s8 %v411
    %v413 = vlaneseq
    %v414 = vshrl.u32 %v413, 7
    %v415 = vsub.s32 %v412, %v414
    %v416 = vrot.slane %v407, %v415
    %v418 = vunpack.c.l.s4 1966171168
    %v419 = vunpack.c.0.s8 %v418
    %v420 = vlaneseq
    %v421 = vshrl.u32 %v420, 7
    %v422 = vsub.s32 %v419, %v421
    %v423 = vrot.slane %v408, %v422
    %v425 = vunpack.c.l.s4 1966171168
    %v426 = vunpack.c.0.s8 %v425
    %v427 = vlaneseq
    %v428 = vshrl.u32 %v427, 7
    %v429 = vsub.s32 %v426, %v428
    %v430 = vrot.slane %v409, %v429
    %v431 = vcombine.low %v416, %v423
    %v433 = vunpack.c.l.s4 1966171168
    %v434 = vunpack.c.0.s8 %v433
    %v435 = vlaneseq
    %v436 = vshrl.u32 %v435, 7
    %v437 = vsub.s32 %v434, %v436
    %v438 = vrot.slane %v431, %v437
    %v440 = vunpack.c.l.s4 1966171168
    %v441 = vunpack.c.0.s8 %v440
    %v442 = vlaneseq
    %v443 = vshrl.u32 %v442, 7
    %v444 = vsub.s32 %v441, %v443
    %v445 = vrot.slane %v430, %v444
    %v446 = vcombine.low %v438, %v445
    %v464 = vunpack.c.l.b16 %v84
    %v465 = vunpack.c.h.b16 %v84
    %v466 = vunpack.c.l.b16 %v85
    %v467 = vunpack.c.h.b16 %v85
    %v468 = vunpack.c.l.b16 %v86
    %v469 = vunpack.c.h.b16 %v86
    %v470 = vunpack.c.l.b16 %v87
    %v471 = vunpack.c.h.b16 %v87
    %v472 = vunpack.c.l.b16 %v88
    %v473 = vunpack.c.h.b16 %v88
    %v474 = vunpack.c.l.b16 %v89
    %v475 = vunpack.c.h.b16 %v89
    %v476 = vunpack.c.l.b16 %v90
    %v477 = vunpack.c.h.b16 %v90
    %v478 = vunpack.c.l.b16 %v91
    %v479 = vunpack.c.h.b16 %v91
    %v480 = vunpack.c.l.b16 %v92
    %v481 = vunpack.c.h.b16 %v92
    %v482 = vunpack.c.l.b16 %v93
    %v483 = vunpack.c.h.b16 %v93
    %v484 = vunpack.c.l.b16 %v94
    %v485 = vunpack.c.h.b16 %v94
    %v486 = vunpack.c.l.b16 %v95
    %v487 = vunpack.c.h.b16 %v95
    %v488 = vunpack.c.l.b16 %v96
    %v489 = vunpack.c.h.b16 %v96
    %v490 = vunpack.c.l.b16 %v97
    %v491 = vunpack.c.h.b16 %v97
    %v492 = vunpack.c.l.b16 %v98
    %v493 = vunpack.c.h.b16 %v98
    %v494 = vunpack.c.l.b16 %v99
    %v495 = vunpack.c.h.b16 %v99
    %v496 = vpack.c.b16 %v466, %v464
    %v497 = vpack.c.b16 %v467, %v465
    %v498 = vpack.c.b16 %v470, %v468
    %v499 = vpack.c.b16 %v471, %v469
    %v500 = vpack.c.b16 %v474, %v472
    %v501 = vpack.c.b16 %v475, %v473
    %v502 = vpack.c.b16 %v478, %v476
    %v503 = vpack.c.b16 %v479, %v477
    %v504 = vpack.c.b16 %v482, %v480
    %v505 = vpack.c.b16 %v483, %v481
    %v506 = vpack.c.b16 %v486, %v484
    %v507 = vpack.c.b16 %v487, %v485
    %v508 = vpack.c.b16 %v490, %v488
    %v509 = vpack.c.b16 %v491, %v489
    %v510 = vpack.c.b16 %v494, %v492
    %v511 = vpack.c.b16 %v495, %v493
    %528 = vmatprep.subr.bf16.mxu0 %v497
    %529 = vmatpush1.bf16.msra.mxu0 %v496
    %530 = vmatprep.subr.bf16.mxu0 %v499
    %531 = vmatpush1.bf16.msra.mxu0 %v498
    %532 = vmatprep.subr.bf16.mxu0 %v501
    %533 = vmatpush1.bf16.msra.mxu0 %v500
    %534 = vmatprep.subr.bf16.mxu0 %v503
    %535 = vmatpush1.bf16.msra.mxu0 %v502
    %536 = vmatprep.subr.bf16.mxu0 %v505
    %537 = vmatpush1.bf16.msra.mxu0 %v504
    %538 = vmatprep.subr.bf16.mxu0 %v507
    %539 = vmatpush1.bf16.msra.mxu0 %v506
    %540 = vmatprep.subr.bf16.mxu0 %v509
    %541 = vmatpush1.bf16.msra.mxu0 %v508
    %542 = vmatprep.subr.bf16.mxu0 %v511
    %543 = vmatpush1.bf16.msra.mxu0 %v510
    %544 = vmatprep.subr.bf16.mxu0 0
    %545 = vmatpush1.bf16.msra.mxu0 0
    %546 = vmatprep.subr.bf16.mxu0 0
    %547 = vmatpush1.bf16.msra.mxu0 0
    %548 = vmatprep.subr.bf16.mxu0 0
    %549 = vmatpush1.bf16.msra.mxu0 0
    %550 = vmatprep.subr.bf16.mxu0 0
    %551 = vmatpush1.bf16.msra.mxu0 0
    %552 = vmatprep.subr.bf16.mxu0 0
    %553 = vmatpush1.bf16.msra.mxu0 0
    %554 = vmatprep.subr.bf16.mxu0 0
    %555 = vmatpush1.bf16.msra.mxu0 0
    %556 = vmatprep.subr.bf16.mxu0 0
    %557 = vmatpush1.bf16.msra.mxu0 0
    %558 = vmatprep.subr.bf16.mxu0 0
    %559 = vmatpush1.bf16.msra.mxu0 0
    %560 = vmatprep.mubr.bf16.mxu0 0
    %561 = vmatmul.mubr.bf16.gmra.mrb[0].mxu0 %v446
    %v562 = vpop.f32.mrb[0].mxu0
    %v563 = vadd.f32 %v400, %v562
    %v564 = vpop.f32.mrb[0].mxu0
    %v565 = vadd.f32 %v404, %v564
    %v566 = vpop.f32.mrb[0].mxu0
    %v567 = vadd.f32 %v400, %v566
    %v568 = vpop.f32.mrb[0].mxu0
    %v569 = vadd.f32 %v404, %v568
    %570 = vdwg.mxu0
    %v575 = vcombine.low %v563, %v565
    %v576 = vcombine.high %v563, %v565
    %v578 = vunpack.c.l.s4 1983009808
    %v579 = vunpack.c.0.s8 %v578
    %v580 = vlaneseq
    %v581 = vshrl.u32 %v580, 7
    %v582 = vsub.s32 %v579, %v581
    %v583 = vrot.slane %v575, %v582
    %v585 = vunpack.c.l.s4 1983009808
    %v586 = vunpack.c.0.s8 %v585
    %v587 = vlaneseq
    %v588 = vshrl.u32 %v587, 7
    %v589 = vsub.s32 %v586, %v588
    %v590 = vrot.slane %v576, %v589
    %v591 = vcombine.high %v583, %v583
    %v592 = vcombine.high %v590, %v590
    %v593 = vcombine.low %v567, %v569
    %v595 = vunpack.c.l.s4 1983009808
    %v596 = vunpack.c.0.s8 %v595
    %v597 = vlaneseq
    %v598 = vshrl.u32 %v597, 7
    %v599 = vsub.s32 %v596, %v598
    %v600 = vrot.slane %v593, %v599
    %v601 = vcombine.high %v600, %v600
    %v602 = vcombine.low %v583, %v591
    %v604 = vunpack.c.l.s4 1983009808
    %v605 = vunpack.c.0.s8 %v604
    %v606 = vlaneseq
    %v607 = vshrl.u32 %v606, 7
    %v608 = vsub.s32 %v605, %v607
    %v609 = vrot.slane %v602, %v608
    %v611 = vunpack.c.l.s4 1983009808
    %v612 = vunpack.c.0.s8 %v611
    %v613 = vlaneseq
    %v614 = vshrl.u32 %v613, 7
    %v615 = vsub.s32 %v612, %v614
    %v616 = vrot.slane %v590, %v615
    %v617 = vcombine.low %v609, %v616
    %v618 = vcombine.high %v609, %v616
    %v619 = vcombine.low %v592, %v600
    %v621 = vunpack.c.l.s4 1983009808
    %v622 = vunpack.c.0.s8 %v621
    %v623 = vlaneseq
    %v624 = vshrl.u32 %v623, 7
    %v625 = vsub.s32 %v622, %v624
    %v626 = vrot.slane %v619, %v625
    %v628 = vunpack.c.l.s4 1983009808
    %v629 = vunpack.c.0.s8 %v628
    %v630 = vlaneseq
    %v631 = vshrl.u32 %v630, 7
    %v632 = vsub.s32 %v629, %v631
    %v633 = vrot.slane %v601, %v632
    %v634 = vcombine.low %v626, %v633
    %v635 = vcombine.high %v626, %v633
    %v640 = vpack.c.bf16 %v617, %v617
    %v641 = vpack.c.bf16 %v618, %v618
    %v642 = vpack.c.bf16 %v634, %v634
    %v643 = vpack.c.bf16 %v635, %v635
    %644 = vmatprep.subr.bf16.mxu0 0
    %645 = vmatpush1.bf16.xpose.msra.mxu0 %v344
    %646 = vmatprep.subr.bf16.mxu0 0
    %647 = vmatpush1.bf16.xpose.msra.mxu0 0
    %648 = vmatprep.subr.bf16.mxu0 0
    %649 = vmatpush1.bf16.xpose.msra.mxu0 0
    %650 = vmatprep.subr.bf16.mxu0 0
    %651 = vmatpush1.bf16.xpose.msra.mxu0 0
    %652 = vmatprep.subr.bf16.mxu0 0
    %653 = vmatpush1.bf16.xpose.msra.mxu0 0
    %654 = vmatprep.subr.bf16.mxu0 0
    %655 = vmatpush1.bf16.xpose.msra.mxu0 0
    %656 = vmatprep.subr.bf16.mxu0 0
    %657 = vmatpush1.bf16.xpose.msra.mxu0 0
    %658 = vmatprep.subr.bf16.mxu0 0
    %659 = vmatpush1.bf16.xpose.msra.mxu0 0
    %660 = vmatprep.subr.bf16.mxu0 0
    %661 = vmatpush1.bf16.xpose.msra.mxu0 0
    %662 = vmatprep.subr.bf16.mxu0 0
    %663 = vmatpush1.bf16.xpose.msra.mxu0 0
    %664 = vmatprep.subr.bf16.mxu0 0
    %665 = vmatpush1.bf16.xpose.msra.mxu0 0
    %666 = vmatprep.subr.bf16.mxu0 0
    %667 = vmatpush1.bf16.xpose.msra.mxu0 0
    %668 = vmatprep.subr.bf16.mxu0 0
    %669 = vmatpush1.bf16.xpose.msra.mxu0 0
    %670 = vmatprep.subr.bf16.mxu0 0
    %671 = vmatpush1.bf16.xpose.msra.mxu0 0
    %672 = vmatprep.subr.bf16.mxu0 0
    %673 = vmatpush1.bf16.xpose.msra.mxu0 0
    %674 = vmatprep.subr.bf16.mxu0 0
    %675 = vmatpush1.bf16.xpose.msra.mxu0 0
    %676 = vmatprep.mubr.bf16.mxu0 0
    %677 = vmatmul.mubr.bf16.gmra.mrb[0].mxu0 %v43
    %v678 = vpop.f32.mrb[0].mxu0
    %v679 = vadd.f32 0.0, %v678
    %v680 = vpop.f32.mrb[0].mxu0
    %v681 = vpop.f32.mrb[0].mxu0
    %v682 = vpop.f32.mrb[0].mxu0
    %683 = vdwg.mxu0
    %684 = vmatprep.subr.bf16.mxu0 0
    %685 = vmatpush1.bf16.xpose.msra.mxu0 %v346
    %686 = vmatprep.subr.bf16.mxu0 0
    %687 = vmatpush1.bf16.xpose.msra.mxu0 0
    %688 = vmatprep.subr.bf16.mxu0 0
    %689 = vmatpush1.bf16.xpose.msra.mxu0 0
    %690 = vmatprep.subr.bf16.mxu0 0
    %691 = vmatpush1.bf16.xpose.msra.mxu0 0
    %692 = vmatprep.subr.bf16.mxu0 0
    %693 = vmatpush1.bf16.xpose.msra.mxu0 0
    %694 = vmatprep.subr.bf16.mxu0 0
    %695 = vmatpush1.bf16.xpose.msra.mxu0 0
    %696 = vmatprep.subr.bf16.mxu0 0
    %697 = vmatpush1.bf16.xpose.msra.mxu0 0
    %698 = vmatprep.subr.bf16.mxu0 0
    %699 = vmatpush1.bf16.xpose.msra.mxu0 0
    %700 = vmatprep.subr.bf16.mxu0 0
    %701 = vmatpush1.bf16.xpose.msra.mxu0 0
    %702 = vmatprep.subr.bf16.mxu0 0
    %703 = vmatpush1.bf16.xpose.msra.mxu0 0
    %704 = vmatprep.subr.bf16.mxu0 0
    %705 = vmatpush1.bf16.xpose.msra.mxu0 0
    %706 = vmatprep.subr.bf16.mxu0 0
    %707 = vmatpush1.bf16.xpose.msra.mxu0 0
    %708 = vmatprep.subr.bf16.mxu0 0
    %709 = vmatpush1.bf16.xpose.msra.mxu0 0
    %710 = vmatprep.subr.bf16.mxu0 0
    %711 = vmatpush1.bf16.xpose.msra.mxu0 0
    %712 = vmatprep.subr.bf16.mxu0 0
    %713 = vmatpush1.bf16.xpose.msra.mxu0 0
    %714 = vmatprep.subr.bf16.mxu0 0
    %715 = vmatpush1.bf16.xpose.msra.mxu0 0
    %716 = vmatprep.mubr.bf16.mxu0 0
    %717 = vmatmul.mubr.bf16.gmra.mrb[0].mxu0 %v44
    %v718 = vpop.f32.mrb[0].mxu0
    %v719 = vadd.f32 0.0, %v718
    %v720 = vpop.f32.mrb[0].mxu0
    %v721 = vpop.f32.mrb[0].mxu0
    %v722 = vpop.f32.mrb[0].mxu0
    %723 = vdwg.mxu0
    %v724 = vlaneseq
    %v725 = vand.u32 %v724, 127
    %v726 = vlaneseq
    %v727 = vshrl.u32 %v726, 7
    %v728 = vsub.s32 0, %v727
    %v729 = vrot.slane %v60, %v728
    %v730 = vlaneseq
    %v731 = vshrl.u32 %v730, 7
    %v732 = vsub.s32 0, %v731
    %v733 = vrot.slane %v67, %v732
    %734 = vset.pattern.permute.xlu0 0
    %735 = vperm.xlu0 %734, %v729
    %v736 = vpop.permute.xlu0 %735
    %737 = vset.pattern.permute.xlu0 0
    %738 = vperm.xlu0 %737, %v733
    %v739 = vpop.permute.xlu0 %738
    %vm740 = vcmp.lt.s32.totalorder %v725, %v736
    %vm741 = vcmp.lt.s32.totalorder %v725, %v739
    %v742 = vsel %vm740, %v679, -100.0
    %v743 = vsel %vm741, %v719, -100.0
    %vm744 = vcmask 60416
    %v745 = vsel %vm744, %v742, -inf
    %746 = vmax.xlane.f32.xlu0 %v745
    %v747 = vpop.xlane.xlu0 %746
    %v748 = vsel %vm744, %v743, -inf
    %749 = vmax.xlane.f32.xlu0 %v748
    %v750 = vpop.xlane.xlu0 %749
    %v751 = vsub.f32 %v742, %v747
    %v752 = vsub.f32 %v743, %v750
    %v753 = vmul.f32 %v751, 1.442695
    %v754 = vpow.pop %v753
    %v755 = vmul.f32 %v752, 1.442695
    %v756 = vpow.pop %v755
    %v757 = vsel %vm744, %v754, 0.0
    %758 = vadd.xlane.f32.xlu0 %v757
    %v759 = vpop.xlane.xlu0 %758
    %v760 = vsel %vm744, %v756, 0.0
    %761 = vadd.xlane.f32.xlu0 %v760
    %v762 = vpop.xlane.xlu0 %761
    %v763 = vrcp.pop %v759
    %v764 = vrcp.pop %v762
    %v765 = vmul.f32 %v754, %v763
    %v766 = vmul.f32 %v756, %v764
    %767 = vmatprep.subr.bf16.mxu0 0
    %768 = vmatpush1.bf16.xpose.msra.mxu0 %v345
    %769 = vmatprep.subr.bf16.mxu0 0
    %770 = vmatpush1.bf16.xpose.msra.mxu0 0
    %771 = vmatprep.subr.bf16.mxu0 0
    %772 = vmatpush1.bf16.xpose.msra.mxu0 0
    %773 = vmatprep.subr.bf16.mxu0 0
    %774 = vmatpush1.bf16.xpose.msra.mxu0 0
    %775 = vmatprep.subr.bf16.mxu0 0
    %776 = vmatpush1.bf16.xpose.msra.mxu0 0
    %777 = vmatprep.subr.bf16.mxu0 0
    %778 = vmatpush1.bf16.xpose.msra.mxu0 0
    %779 = vmatprep.subr.bf16.mxu0 0
    %780 = vmatpush1.bf16.xpose.msra.mxu0 0
    %781 = vmatprep.subr.bf16.mxu0 0
    %782 = vmatpush1.bf16.xpose.msra.mxu0 0
    %783 = vmatprep.subr.bf16.mxu0 0
    %784 = vmatpush1.bf16.xpose.msra.mxu0 0
    %785 = vmatprep.subr.bf16.mxu0 0
    %786 = vmatpush1.bf16.xpose.msra.mxu0 0
    %787 = vmatprep.subr.bf16.mxu0 0
    %788 = vmatpush1.bf16.xpose.msra.mxu0 0
    %789 = vmatprep.subr.bf16.mxu0 0
    %790 = vmatpush1.bf16.xpose.msra.mxu0 0
    %791 = vmatprep.subr.bf16.mxu0 0
    %792 = vmatpush1.bf16.xpose.msra.mxu0 0
    %793 = vmatprep.subr.bf16.mxu0 0
    %794 = vmatpush1.bf16.xpose.msra.mxu0 0
    %795 = vmatprep.subr.bf16.mxu0 0
    %796 = vmatpush1.bf16.xpose.msra.mxu0 0
    %797 = vmatprep.subr.bf16.mxu0 0
    %798 = vmatpush1.bf16.xpose.msra.mxu0 0
    %799 = vmatprep.mubr.bf16.mxu0 0
    %800 = vmatmul.mubr.bf16.gmra.mrb[0].mxu0 %v43
    %v801 = vpop.f32.mrb[0].mxu0
    %v802 = vadd.f32 0.0, %v801
    %v803 = vpop.f32.mrb[0].mxu0
    %v804 = vpop.f32.mrb[0].mxu0
    %v805 = vpop.f32.mrb[0].mxu0
    %806 = vdwg.mxu0
    %807 = vmatprep.subr.bf16.mxu0 0
    %808 = vmatpush1.bf16.xpose.msra.mxu0 %v347
    %809 = vmatprep.subr.bf16.mxu0 0
    %810 = vmatpush1.bf16.xpose.msra.mxu0 0
    %811 = vmatprep.subr.bf16.mxu0 0
    %812 = vmatpush1.bf16.xpose.msra.mxu0 0
    %813 = vmatprep.subr.bf16.mxu0 0
    %814 = vmatpush1.bf16.xpose.msra.mxu0 0
    %815 = vmatprep.subr.bf16.mxu0 0
    %816 = vmatpush1.bf16.xpose.msra.mxu0 0
    %817 = vmatprep.subr.bf16.mxu0 0
    %818 = vmatpush1.bf16.xpose.msra.mxu0 0
    %819 = vmatprep.subr.bf16.mxu0 0
    %820 = vmatpush1.bf16.xpose.msra.mxu0 0
    %821 = vmatprep.subr.bf16.mxu0 0
    %822 = vmatpush1.bf16.xpose.msra.mxu0 0
    %823 = vmatprep.subr.bf16.mxu0 0
    %824 = vmatpush1.bf16.xpose.msra.mxu0 0
    %825 = vmatprep.subr.bf16.mxu0 0
    %826 = vmatpush1.bf16.xpose.msra.mxu0 0
    %827 = vmatprep.subr.bf16.mxu0 0
    %828 = vmatpush1.bf16.xpose.msra.mxu0 0
    %829 = vmatprep.subr.bf16.mxu0 0
    %830 = vmatpush1.bf16.xpose.msra.mxu0 0
    %831 = vmatprep.subr.bf16.mxu0 0
    %832 = vmatpush1.bf16.xpose.msra.mxu0 0
    %833 = vmatprep.subr.bf16.mxu0 0
    %834 = vmatpush1.bf16.xpose.msra.mxu0 0
    %835 = vmatprep.subr.bf16.mxu0 0
    %836 = vmatpush1.bf16.xpose.msra.mxu0 0
    %837 = vmatprep.subr.bf16.mxu0 0
    %838 = vmatpush1.bf16.xpose.msra.mxu0 0
    %839 = vmatprep.mubr.bf16.mxu0 0
    %840 = vmatmul.mubr.bf16.gmra.mrb[0].mxu0 %v44
    %v841 = vpop.f32.mrb[0].mxu0
    %v842 = vadd.f32 0.0, %v841
    %v843 = vpop.f32.mrb[0].mxu0
    %v844 = vpop.f32.mrb[0].mxu0
    %v845 = vpop.f32.mrb[0].mxu0
    %846 = vdwg.mxu0
    %v847 = vsel %vm740, %v802, -100.0
    %v848 = vsel %vm741, %v842, -100.0
    %v849 = vsel %vm744, %v847, -inf
    %850 = vmax.xlane.f32.xlu0 %v849
    %v851 = vpop.xlane.xlu0 %850
    %v852 = vsel %vm744, %v848, -inf
    %853 = vmax.xlane.f32.xlu0 %v852
    %v854 = vpop.xlane.xlu0 %853
    %v855 = vsub.f32 %v847, %v851
    %v856 = vsub.f32 %v848, %v854
    %v857 = vmul.f32 %v855, 1.442695
    %v858 = vpow.pop %v857
    %v859 = vmul.f32 %v856, 1.442695
    %v860 = vpow.pop %v859
    %v861 = vsel %vm744, %v858, 0.0
    %862 = vadd.xlane.f32.xlu0 %v861
    %v863 = vpop.xlane.xlu0 %862
    %v864 = vsel %vm744, %v860, 0.0
    %865 = vadd.xlane.f32.xlu0 %v864
    %v866 = vpop.xlane.xlu0 %865
    %v867 = vrcp.pop %v863
    %v868 = vrcp.pop %v866
    %v869 = vmul.f32 %v858, %v867
    %v870 = vmul.f32 %v860, %v868
    %871 = vmatprep.subr.bf16.mxu0 0
    %872 = vmatpush1.bf16.xpose.msra.mxu0 %v640
    %873 = vmatprep.subr.bf16.mxu0 0
    %874 = vmatpush1.bf16.xpose.msra.mxu0 0
    %875 = vmatprep.subr.bf16.mxu0 0
    %876 = vmatpush1.bf16.xpose.msra.mxu0 0
    %877 = vmatprep.subr.bf16.mxu0 0
    %878 = vmatpush1.bf16.xpose.msra.mxu0 0
    %879 = vmatprep.subr.bf16.mxu0 0
    %880 = vmatpush1.bf16.xpose.msra.mxu0 0
    %881 = vmatprep.subr.bf16.mxu0 0
    %882 = vmatpush1.bf16.xpose.msra.mxu0 0
    %883 = vmatprep.subr.bf16.mxu0 0
    %884 = vmatpush1.bf16.xpose.msra.mxu0 0
    %885 = vmatprep.subr.bf16.mxu0 0
    %886 = vmatpush1.bf16.xpose.msra.mxu0 0
    %887 = vmatprep.subr.bf16.mxu0 0
    %888 = vmatpush1.bf16.xpose.msra.mxu0 0
    %889 = vmatprep.subr.bf16.mxu0 0
    %890 = vmatpush1.bf16.xpose.msra.mxu0 0
    %891 = vmatprep.subr.bf16.mxu0 0
    %892 = vmatpush1.bf16.xpose.msra.mxu0 0
    %893 = vmatprep.subr.bf16.mxu0 0
    %894 = vmatpush1.bf16.xpose.msra.mxu0 0
    %895 = vmatprep.subr.bf16.mxu0 0
    %896 = vmatpush1.bf16.xpose.msra.mxu0 0
    %897 = vmatprep.subr.bf16.mxu0 0
    %898 = vmatpush1.bf16.xpose.msra.mxu0 0
    %899 = vmatprep.subr.bf16.mxu0 0
    %900 = vmatpush1.bf16.xpose.msra.mxu0 0
    %901 = vmatprep.subr.bf16.mxu0 0
    %902 = vmatpush1.bf16.xpose.msra.mxu0 0
    %903 = vmatprep.mubr.bf16.mxu0 0
    %904 = vmatmul.mubr.bf16.gmra.mrb[0].mxu0 %v43
    %v905 = vpop.f32.mrb[0].mxu0
    %v906 = vadd.f32 0.0, %v905
    %v907 = vpop.f32.mrb[0].mxu0
    %v908 = vpop.f32.mrb[0].mxu0
    %v909 = vpop.f32.mrb[0].mxu0
    %910 = vdwg.mxu0
    %911 = vmatprep.subr.bf16.mxu0 0
    %912 = vmatpush1.bf16.xpose.msra.mxu0 %v642
    %913 = vmatprep.subr.bf16.mxu0 0
    %914 = vmatpush1.bf16.xpose.msra.mxu0 0
    %915 = vmatprep.subr.bf16.mxu0 0
    %916 = vmatpush1.bf16.xpose.msra.mxu0 0
    %917 = vmatprep.subr.bf16.mxu0 0
    %918 = vmatpush1.bf16.xpose.msra.mxu0 0
    %919 = vmatprep.subr.bf16.mxu0 0
    %920 = vmatpush1.bf16.xpose.msra.mxu0 0
    %921 = vmatprep.subr.bf16.mxu0 0
    %922 = vmatpush1.bf16.xpose.msra.mxu0 0
    %923 = vmatprep.subr.bf16.mxu0 0
    %924 = vmatpush1.bf16.xpose.msra.mxu0 0
    %925 = vmatprep.subr.bf16.mxu0 0
    %926 = vmatpush1.bf16.xpose.msra.mxu0 0
    %927 = vmatprep.subr.bf16.mxu0 0
    %928 = vmatpush1.bf16.xpose.msra.mxu0 0
    %929 = vmatprep.subr.bf16.mxu0 0
    %930 = vmatpush1.bf16.xpose.msra.mxu0 0
    %931 = vmatprep.subr.bf16.mxu0 0
    %932 = vmatpush1.bf16.xpose.msra.mxu0 0
    %933 = vmatprep.subr.bf16.mxu0 0
    %934 = vmatpush1.bf16.xpose.msra.mxu0 0
    %935 = vmatprep.subr.bf16.mxu0 0
    %936 = vmatpush1.bf16.xpose.msra.mxu0 0
    %937 = vmatprep.subr.bf16.mxu0 0
    %938 = vmatpush1.bf16.xpose.msra.mxu0 0
    %939 = vmatprep.subr.bf16.mxu0 0
    %940 = vmatpush1.bf16.xpose.msra.mxu0 0
    %941 = vmatprep.subr.bf16.mxu0 0
    %942 = vmatpush1.bf16.xpose.msra.mxu0 0
    %943 = vmatprep.mubr.bf16.mxu0 0
    %944 = vmatmul.mubr.bf16.gmra.mrb[0].mxu0 %v44
    %v945 = vpop.f32.mrb[0].mxu0
    %v946 = vadd.f32 0.0, %v945
    %v947 = vpop.f32.mrb[0].mxu0
    %v948 = vpop.f32.mrb[0].mxu0
    %v949 = vpop.f32.mrb[0].mxu0
    %950 = vdwg.mxu0
    %951 = vset.pattern.permute.xlu0 1
    %952 = vperm.xlu0 %951, %v729
    %v953 = vpop.permute.xlu0 %952
    %954 = vset.pattern.permute.xlu0 1
    %955 = vperm.xlu0 %954, %v733
    %v956 = vpop.permute.xlu0 %955
    %vm957 = vcmp.lt.s32.totalorder %v725, %v953
    %vm958 = vcmp.lt.s32.totalorder %v725, %v956
    %v959 = vsel %vm957, %v906, -100.0
    %v960 = vsel %vm958, %v946, -100.0
    %vm961 = vcmask 44032
    %v962 = vsel %vm961, %v959, -inf
    %963 = vmax.xlane.f32.xlu0 %v962
    %v964 = vpop.xlane.xlu0 %963
    %v965 = vsel %vm961, %v960, -inf
    %966 = vmax.xlane.f32.xlu0 %v965
    %v967 = vpop.xlane.xlu0 %966
    %v968 = vsub.f32 %v959, %v964
    %v969 = vsub.f32 %v960, %v967
    %v970 = vmul.f32 %v968, 1.442695
    %v971 = vpow.pop %v970
    %v972 = vmul.f32 %v969, 1.442695
    %v973 = vpow.pop %v972
    %v974 = vsel %vm961, %v971, 0.0
    %975 = vadd.xlane.f32.xlu0 %v974
    %v976 = vpop.xlane.xlu0 %975
    %v977 = vsel %vm961, %v973, 0.0
    %978 = vadd.xlane.f32.xlu0 %v977
    %v979 = vpop.xlane.xlu0 %978
    %v980 = vrcp.pop %v976
    %v981 = vrcp.pop %v979
    %v982 = vmul.f32 %v971, %v980
    %v983 = vmul.f32 %v973, %v981
    %984 = vmatprep.subr.bf16.mxu0 0
    %985 = vmatpush1.bf16.xpose.msra.mxu0 %v641
    %986 = vmatprep.subr.bf16.mxu0 0
    %987 = vmatpush1.bf16.xpose.msra.mxu0 0
    %988 = vmatprep.subr.bf16.mxu0 0
    %989 = vmatpush1.bf16.xpose.msra.mxu0 0
    %990 = vmatprep.subr.bf16.mxu0 0
    %991 = vmatpush1.bf16.xpose.msra.mxu0 0
    %992 = vmatprep.subr.bf16.mxu0 0
    %993 = vmatpush1.bf16.xpose.msra.mxu0 0
    %994 = vmatprep.subr.bf16.mxu0 0
    %995 = vmatpush1.bf16.xpose.msra.mxu0 0
    %996 = vmatprep.subr.bf16.mxu0 0
    %997 = vmatpush1.bf16.xpose.msra.mxu0 0
    %998 = vmatprep.subr.bf16.mxu0 0
    %999 = vmatpush1.bf16.xpose.msra.mxu0 0
    %1000 = vmatprep.subr.bf16.mxu0 0
    %1001 = vmatpush1.bf16.xpose.msra.mxu0 0
    %1002 = vmatprep.subr.bf16.mxu0 0
    %1003 = vmatpush1.bf16.xpose.msra.mxu0 0
    %1004 = vmatprep.subr.bf16.mxu0 0
    %1005 = vmatpush1.bf16.xpose.msra.mxu0 0
    %1006 = vmatprep.subr.bf16.mxu0 0
    %1007 = vmatpush1.bf16.xpose.msra.mxu0 0
    %1008 = vmatprep.subr.bf16.mxu0 0
    %1009 = vmatpush1.bf16.xpose.msra.mxu0 0
    %1010 = vmatprep.subr.bf16.mxu0 0
    %1011 = vmatpush1.bf16.xpose.msra.mxu0 0
    %1012 = vmatprep.subr.bf16.mxu0 0
    %1013 = vmatpush1.bf16.xpose.msra.mxu0 0
    %1014 = vmatprep.subr.bf16.mxu0 0
    %1015 = vmatpush1.bf16.xpose.msra.mxu0 0
    %1016 = vmatprep.mubr.bf16.mxu0 0
    %1017 = vmatmul.mubr.bf16.gmra.mrb[0].mxu0 %v43
    %v1018 = vpop.f32.mrb[0].mxu0
    %v1019 = vadd.f32 0.0, %v1018
    %v1020 = vpop.f32.mrb[0].mxu0
    %v1021 = vpop.f32.mrb[0].mxu0
    %v1022 = vpop.f32.mrb[0].mxu0
    %1023 = vdwg.mxu0
    %1024 = vmatprep.subr.bf16.mxu0 0
    %1025 = vmatpush1.bf16.xpose.msra.mxu0 %v643
    %1026 = vmatprep.subr.bf16.mxu0 0
    %1027 = vmatpush1.bf16.xpose.msra.mxu0 0
    %1028 = vmatprep.subr.bf16.mxu0 0
    %1029 = vmatpush1.bf16.xpose.msra.mxu0 0
    %1030 = vmatprep.subr.bf16.mxu0 0
    %1031 = vmatpush1.bf16.xpose.msra.mxu0 0
    %1032 = vmatprep.subr.bf16.mxu0 0
    %1033 = vmatpush1.bf16.xpose.msra.mxu0 0
    %1034 = vmatprep.subr.bf16.mxu0 0
    %1035 = vmatpush1.bf16.xpose.msra.mxu0 0
    %1036 = vmatprep.subr.bf16.mxu0 0
    %1037 = vmatpush1.bf16.xpose.msra.mxu0 0
    %1038 = vmatprep.subr.bf16.mxu0 0
    %1039 = vmatpush1.bf16.xpose.msra.mxu0 0
    %1040 = vmatprep.subr.bf16.mxu0 0
    %1041 = vmatpush1.bf16.xpose.msra.mxu0 0
    %1042 = vmatprep.subr.bf16.mxu0 0
    %1043 = vmatpush1.bf16.xpose.msra.mxu0 0
    %1044 = vmatprep.subr.bf16.mxu0 0
    %1045 = vmatpush1.bf16.xpose.msra.mxu0 0
    %1046 = vmatprep.subr.bf16.mxu0 0
    %1047 = vmatpush1.bf16.xpose.msra.mxu0 0
    %1048 = vmatprep.subr.bf16.mxu0 0
    %1049 = vmatpush1.bf16.xpose.msra.mxu0 0
    %1050 = vmatprep.subr.bf16.mxu0 0
    %1051 = vmatpush1.bf16.xpose.msra.mxu0 0
    %1052 = vmatprep.subr.bf16.mxu0 0
    %1053 = vmatpush1.bf16.xpose.msra.mxu0 0
    %1054 = vmatprep.subr.bf16.mxu0 0
    %1055 = vmatpush1.bf16.xpose.msra.mxu0 0
    %1056 = vmatprep.mubr.bf16.mxu0 0
    %1057 = vmatmul.mubr.bf16.gmra.mrb[0].mxu0 %v44
    %v1058 = vpop.f32.mrb[0].mxu0
    %v1059 = vadd.f32 0.0, %v1058
    %v1060 = vpop.f32.mrb[0].mxu0
    %v1061 = vpop.f32.mrb[0].mxu0
    %v1062 = vpop.f32.mrb[0].mxu0
    %1063 = vdwg.mxu0
    %v1064 = vsel %vm957, %v1019, -100.0
    %v1065 = vsel %vm958, %v1059, -100.0
    %v1066 = vsel %vm961, %v1064, -inf
    %1067 = vmax.xlane.f32.xlu0 %v1066
    %v1068 = vpop.xlane.xlu0 %1067
    %v1069 = vsel %vm961, %v1065, -inf
    %1070 = vmax.xlane.f32.xlu0 %v1069
    %v1071 = vpop.xlane.xlu0 %1070
    %v1072 = vsub.f32 %v1064, %v1068
    %v1073 = vsub.f32 %v1065, %v1071
    %v1074 = vmul.f32 %v1072, 1.442695
    %v1075 = vpow.pop %v1074
    %v1076 = vmul.f32 %v1073, 1.442695
    %v1077 = vpow.pop %v1076
    %v1078 = vsel %vm961, %v1075, 0.0
    %1079 = vadd.xlane.f32.xlu0 %v1078
    %v1080 = vpop.xlane.xlu0 %1079
    %v1081 = vsel %vm961, %v1077, 0.0
    %1082 = vadd.xlane.f32.xlu0 %v1081
    %v1083 = vpop.xlane.xlu0 %1082
    %v1084 = vrcp.pop %v1080
    %v1085 = vrcp.pop %v1083
    %v1086 = vmul.f32 %v1075, %v1084
    %v1087 = vmul.f32 %v1077, %v1085
    %v1088 = vsel %vm744, %v765, 0.0
    %v1089 = vrot.slane %v1088, 4
    %v1090 = vadd.f32 %v1088, %v1089
    %v1091 = vrot.slane %v1090, 2
    %v1092 = vadd.f32 %v1090, %v1091
    %v1093 = vrot.slane %v1092, 1
    %v1094 = vadd.f32 %v1092, %v1093
    %v1095 = vsel %vm744, %v766, 0.0
    %v1096 = vrot.slane %v1095, 4
    %v1097 = vadd.f32 %v1095, %v1096
    %v1098 = vrot.slane %v1097, 2
    %v1099 = vadd.f32 %v1097, %v1098
    %v1100 = vrot.slane %v1099, 1
    %v1101 = vadd.f32 %v1099, %v1100
    %v1104 = vrot.slane %v869, 7
    %v1105 = vrot.slane %v870, 7
    %vm1108 = vcmask 1040384
    %v1109 = vsel %vm1108, %v1094, %v1104
    %v1110 = vsel %vm1108, %v1101, %v1105
    %v1111 = vpack.c.bf16 %v1109, %v1109
    %v1112 = vpack.c.bf16 %v1110, %v1110
    %vm1113 = vcmask 64512
    %v1115 = vsel %vm1113, %v1111, 0
    %vm1117 = vcmask 1043456
    %v1119 = vsel %vm1117, %v39, 0
    %1121 = vmatprep.subr.bf16.mxu0 0
    %1122 = vmatpush1.bf16.msra.mxu0 %v1119
    %1123 = vmatprep.subr.bf16.mxu0 0
    %1124 = vmatpush1.bf16.msra.mxu0 0
    %1125 = vmatprep.subr.bf16.mxu0 0
    %1126 = vmatpush1.bf16.msra.mxu0 0
    %1127 = vmatprep.subr.bf16.mxu0 0
    %1128 = vmatpush1.bf16.msra.mxu0 0
    %1129 = vmatprep.subr.bf16.mxu0 0
    %1130 = vmatpush1.bf16.msra.mxu0 0
    %1131 = vmatprep.subr.bf16.mxu0 0
    %1132 = vmatpush1.bf16.msra.mxu0 0
    %1133 = vmatprep.subr.bf16.mxu0 0
    %1134 = vmatpush1.bf16.msra.mxu0 0
    %1135 = vmatprep.subr.bf16.mxu0 0
    %1136 = vmatpush1.bf16.msra.mxu0 0
    %1137 = vmatprep.subr.bf16.mxu0 0
    %1138 = vmatpush1.bf16.msra.mxu0 0
    %1139 = vmatprep.subr.bf16.mxu0 0
    %1140 = vmatpush1.bf16.msra.mxu0 0
    %1141 = vmatprep.subr.bf16.mxu0 0
    %1142 = vmatpush1.bf16.msra.mxu0 0
    %1143 = vmatprep.subr.bf16.mxu0 0
    %1144 = vmatpush1.bf16.msra.mxu0 0
    %1145 = vmatprep.subr.bf16.mxu0 0
    %1146 = vmatpush1.bf16.msra.mxu0 0
    %1147 = vmatprep.subr.bf16.mxu0 0
    %1148 = vmatpush1.bf16.msra.mxu0 0
    %1149 = vmatprep.subr.bf16.mxu0 0
    %1150 = vmatpush1.bf16.msra.mxu0 0
    %1151 = vmatprep.subr.bf16.mxu0 0
    %1152 = vmatpush1.bf16.msra.mxu0 0
    %1153 = vmatprep.mubr.bf16.mxu0 0
    %1154 = vmatmul.mubr.bf16.gmra.mrb[0].mxu0 %v1115
    %v1155 = vpop.f32.mrb[0].mxu0
    %v1156 = vadd.f32 0.0, %v1155
    %v1157 = vpop.f32.mrb[0].mxu0
    %v1158 = vpop.f32.mrb[0].mxu0
    %v1159 = vpop.f32.mrb[0].mxu0
    %1160 = vdwg.mxu0
    %v1162 = vsel %vm1113, %v1112, 0
    %v1165 = vsel %vm1117, %v40, 0
    %1167 = vmatprep.subr.bf16.mxu0 0
    %1168 = vmatpush1.bf16.msra.mxu0 %v1165
    %1169 = vmatprep.subr.bf16.mxu0 0
    %1170 = vmatpush1.bf16.msra.mxu0 0
    %1171 = vmatprep.subr.bf16.mxu0 0
    %1172 = vmatpush1.bf16.msra.mxu0 0
    %1173 = vmatprep.subr.bf16.mxu0 0
    %1174 = vmatpush1.bf16.msra.mxu0 0
    %1175 = vmatprep.subr.bf16.mxu0 0
    %1176 = vmatpush1.bf16.msra.mxu0 0
    %1177 = vmatprep.subr.bf16.mxu0 0
    %1178 = vmatpush1.bf16.msra.mxu0 0
    %1179 = vmatprep.subr.bf16.mxu0 0
    %1180 = vmatpush1.bf16.msra.mxu0 0
    %1181 = vmatprep.subr.bf16.mxu0 0
    %1182 = vmatpush1.bf16.msra.mxu0 0
    %1183 = vmatprep.subr.bf16.mxu0 0
    %1184 = vmatpush1.bf16.msra.mxu0 0
    %1185 = vmatprep.subr.bf16.mxu0 0
    %1186 = vmatpush1.bf16.msra.mxu0 0
    %1187 = vmatprep.subr.bf16.mxu0 0
    %1188 = vmatpush1.bf16.msra.mxu0 0
    %1189 = vmatprep.subr.bf16.mxu0 0
    %1190 = vmatpush1.bf16.msra.mxu0 0
    %1191 = vmatprep.subr.bf16.mxu0 0
    %1192 = vmatpush1.bf16.msra.mxu0 0
    %1193 = vmatprep.subr.bf16.mxu0 0
    %1194 = vmatpush1.bf16.msra.mxu0 0
    %1195 = vmatprep.subr.bf16.mxu0 0
    %1196 = vmatpush1.bf16.msra.mxu0 0
    %1197 = vmatprep.subr.bf16.mxu0 0
    %1198 = vmatpush1.bf16.msra.mxu0 0
    %1199 = vmatprep.mubr.bf16.mxu0 0
    %1200 = vmatmul.mubr.bf16.gmra.mrb[0].mxu0 %v1162
    %v1201 = vpop.f32.mrb[0].mxu0
    %v1202 = vadd.f32 0.0, %v1201
    %v1203 = vpop.f32.mrb[0].mxu0
    %v1204 = vpop.f32.mrb[0].mxu0
    %v1205 = vpop.f32.mrb[0].mxu0
    %1206 = vdwg.mxu0
    %v1207 = vsel %vm961, %v982, 0.0
    %v1208 = vrot.slane %v1207, 4
    %v1209 = vadd.f32 %v1207, %v1208
    %v1210 = vrot.slane %v1209, 2
    %v1211 = vadd.f32 %v1209, %v1210
    %v1212 = vrot.slane %v1211, 1
    %v1213 = vadd.f32 %v1211, %v1212
    %v1214 = vsel %vm961, %v983, 0.0
    %v1215 = vrot.slane %v1214, 4
    %v1216 = vadd.f32 %v1214, %v1215
    %v1217 = vrot.slane %v1216, 2
    %v1218 = vadd.f32 %v1216, %v1217
    %v1219 = vrot.slane %v1218, 1
    %v1220 = vadd.f32 %v1218, %v1219
    %v1223 = vrot.slane %v1086, 7
    %v1224 = vrot.slane %v1087, 7
    %v1227 = vsel %vm1108, %v1213, %v1223
    %v1228 = vsel %vm1108, %v1220, %v1224
    %v1229 = vpack.c.bf16 %v1227, %v1227
    %v1230 = vpack.c.bf16 %v1228, %v1228
    %vm1231 = vcmask 48128
    %v1233 = vsel %vm1231, %v1229, 0
    %vm1235 = vcmask 1042432
    %v1237 = vsel %vm1235, %v41, 0
    %1239 = vmatprep.subr.bf16.mxu0 0
    %1240 = vmatpush1.bf16.msra.mxu0 %v1237
    %1241 = vmatprep.subr.bf16.mxu0 0
    %1242 = vmatpush1.bf16.msra.mxu0 0
    %1243 = vmatprep.subr.bf16.mxu0 0
    %1244 = vmatpush1.bf16.msra.mxu0 0
    %1245 = vmatprep.subr.bf16.mxu0 0
    %1246 = vmatpush1.bf16.msra.mxu0 0
    %1247 = vmatprep.subr.bf16.mxu0 0
    %1248 = vmatpush1.bf16.msra.mxu0 0
    %1249 = vmatprep.subr.bf16.mxu0 0
    %1250 = vmatpush1.bf16.msra.mxu0 0
    %1251 = vmatprep.subr.bf16.mxu0 0
    %1252 = vmatpush1.bf16.msra.mxu0 0
    %1253 = vmatprep.subr.bf16.mxu0 0
    %1254 = vmatpush1.bf16.msra.mxu0 0
    %1255 = vmatprep.subr.bf16.mxu0 0
    %1256 = vmatpush1.bf16.msra.mxu0 0
    %1257 = vmatprep.subr.bf16.mxu0 0
    %1258 = vmatpush1.bf16.msra.mxu0 0
    %1259 = vmatprep.subr.bf16.mxu0 0
    %1260 = vmatpush1.bf16.msra.mxu0 0
    %1261 = vmatprep.subr.bf16.mxu0 0
    %1262 = vmatpush1.bf16.msra.mxu0 0
    %1263 = vmatprep.subr.bf16.mxu0 0
    %1264 = vmatpush1.bf16.msra.mxu0 0
    %1265 = vmatprep.subr.bf16.mxu0 0
    %1266 = vmatpush1.bf16.msra.mxu0 0
    %1267 = vmatprep.subr.bf16.mxu0 0
    %1268 = vmatpush1.bf16.msra.mxu0 0
    %1269 = vmatprep.subr.bf16.mxu0 0
    %1270 = vmatpush1.bf16.msra.mxu0 0
    %1271 = vmatprep.mubr.bf16.mxu0 0
    %1272 = vmatmul.mubr.bf16.gmra.mrb[0].mxu0 %v1233
    %v1273 = vpop.f32.mrb[0].mxu0
    %v1274 = vadd.f32 0.0, %v1273
    %v1275 = vpop.f32.mrb[0].mxu0
    %v1276 = vpop.f32.mrb[0].mxu0
    %v1277 = vpop.f32.mrb[0].mxu0
    %1278 = vdwg.mxu0
    %v1280 = vsel %vm1231, %v1230, 0
    %v1283 = vsel %vm1235, %v42, 0
    %1285 = vmatprep.subr.bf16.mxu0 0
    %1286 = vmatpush1.bf16.msra.mxu0 %v1283
    %1287 = vmatprep.subr.bf16.mxu0 0
    %1288 = vmatpush1.bf16.msra.mxu0 0
    %1289 = vmatprep.subr.bf16.mxu0 0
    %1290 = vmatpush1.bf16.msra.mxu0 0
    %1291 = vmatprep.subr.bf16.mxu0 0
    %1292 = vmatpush1.bf16.msra.mxu0 0
    %1293 = vmatprep.subr.bf16.mxu0 0
    %1294 = vmatpush1.bf16.msra.mxu0 0
    %1295 = vmatprep.subr.bf16.mxu0 0
    %1296 = vmatpush1.bf16.msra.mxu0 0
    %1297 = vmatprep.subr.bf16.mxu0 0
    %1298 = vmatpush1.bf16.msra.mxu0 0
    %1299 = vmatprep.subr.bf16.mxu0 0
    %1300 = vmatpush1.bf16.msra.mxu0 0
    %1301 = vmatprep.subr.bf16.mxu0 0
    %1302 = vmatpush1.bf16.msra.mxu0 0
    %1303 = vmatprep.subr.bf16.mxu0 0
    %1304 = vmatpush1.bf16.msra.mxu0 0
    %1305 = vmatprep.subr.bf16.mxu0 0
    %1306 = vmatpush1.bf16.msra.mxu0 0
    %1307 = vmatprep.subr.bf16.mxu0 0
    %1308 = vmatpush1.bf16.msra.mxu0 0
    %1309 = vmatprep.subr.bf16.mxu0 0
    %1310 = vmatpush1.bf16.msra.mxu0 0
    %1311 = vmatprep.subr.bf16.mxu0 0
    %1312 = vmatpush1.bf16.msra.mxu0 0
    %1313 = vmatprep.subr.bf16.mxu0 0
    %1314 = vmatpush1.bf16.msra.mxu0 0
    %1315 = vmatprep.subr.bf16.mxu0 0
    %1316 = vmatpush1.bf16.msra.mxu0 0
    %1317 = vmatprep.mubr.bf16.mxu0 0
    %1318 = vmatmul.mubr.bf16.gmra.mrb[0].mxu0 %v1280
    %v1319 = vpop.f32.mrb[0].mxu0
    %v1320 = vadd.f32 0.0, %v1319
    %v1321 = vpop.f32.mrb[0].mxu0
    %v1322 = vpop.f32.mrb[0].mxu0
    %v1323 = vpop.f32.mrb[0].mxu0
    %1324 = vdwg.mxu0
    %v1327 = vrot.slane %v1202, 7
    %vm1328 = vcmask 1041409
    %v1329 = vsel %vm1328, %v1327, %v1156
    %v1333 = vrot.slane %v1320, 7
    %v1334 = vsel %vm1328, %v1333, %v1274
    %v1336 = vpack.c.bf16 %v1329, %v1329
    %v1337 = vpack.c.bf16 %v1334, %v1334
    %v1370 = vunpack.c.l.b16 %v100
    %v1371 = vunpack.c.l.b16 %v101
    %v1372 = vunpack.c.l.b16 %v102
    %v1373 = vunpack.c.l.b16 %v103
    %v1374 = vunpack.c.l.b16 %v104
    %v1375 = vunpack.c.l.b16 %v105
    %v1376 = vunpack.c.l.b16 %v106
    %v1377 = vunpack.c.l.b16 %v107
    %v1378 = vunpack.c.l.b16 %v108
    %v1379 = vunpack.c.l.b16 %v109
    %v1380 = vunpack.c.l.b16 %v110
    %v1381 = vunpack.c.l.b16 %v111
    %v1382 = vunpack.c.l.b16 %v112
    %v1383 = vunpack.c.l.b16 %v113
    %v1384 = vunpack.c.l.b16 %v114
    %v1385 = vunpack.c.l.b16 %v115
    %v1386 = vunpack.c.l.b16 %v116
    %v1387 = vunpack.c.l.b16 %v117
    %v1388 = vunpack.c.l.b16 %v118
    %v1389 = vunpack.c.l.b16 %v119
    %v1390 = vunpack.c.l.b16 %v120
    %v1391 = vunpack.c.l.b16 %v121
    %v1392 = vunpack.c.l.b16 %v122
    %v1393 = vunpack.c.l.b16 %v123
    %v1394 = vunpack.c.l.b16 %v124
    %v1395 = vunpack.c.l.b16 %v125
    %v1396 = vunpack.c.l.b16 %v126
    %v1397 = vunpack.c.l.b16 %v127
    %v1398 = vunpack.c.l.b16 %v128
    %v1399 = vunpack.c.l.b16 %v129
    %v1400 = vunpack.c.l.b16 %v130
    %v1401 = vunpack.c.l.b16 %v131
    %v1402 = vpack.c.b16 %v1371, %v1370
    %v1403 = vpack.c.b16 %v1373, %v1372
    %v1404 = vpack.c.b16 %v1375, %v1374
    %v1405 = vpack.c.b16 %v1377, %v1376
    %v1406 = vpack.c.b16 %v1379, %v1378
    %v1407 = vpack.c.b16 %v1381, %v1380
    %v1408 = vpack.c.b16 %v1383, %v1382
    %v1409 = vpack.c.b16 %v1385, %v1384
    %v1410 = vpack.c.b16 %v1387, %v1386
    %v1411 = vpack.c.b16 %v1389, %v1388
    %v1412 = vpack.c.b16 %v1391, %v1390
    %v1413 = vpack.c.b16 %v1393, %v1392
    %v1414 = vpack.c.b16 %v1395, %v1394
    %v1415 = vpack.c.b16 %v1397, %v1396
    %v1416 = vpack.c.b16 %v1399, %v1398
    %v1417 = vpack.c.b16 %v1401, %v1400
    %1434 = vmatprep.subr.bf16.mxu0 0
    %1435 = vmatpush1.bf16.msra.mxu0 %v1402
    %1436 = vmatprep.subr.bf16.mxu0 0
    %1437 = vmatpush1.bf16.msra.mxu0 %v1403
    %1438 = vmatprep.subr.bf16.mxu0 0
    %1439 = vmatpush1.bf16.msra.mxu0 %v1404
    %1440 = vmatprep.subr.bf16.mxu0 0
    %1441 = vmatpush1.bf16.msra.mxu0 %v1405
    %1442 = vmatprep.subr.bf16.mxu0 0
    %1443 = vmatpush1.bf16.msra.mxu0 %v1406
    %1444 = vmatprep.subr.bf16.mxu0 0
    %1445 = vmatpush1.bf16.msra.mxu0 %v1407
    %1446 = vmatprep.subr.bf16.mxu0 0
    %1447 = vmatpush1.bf16.msra.mxu0 %v1408
    %1448 = vmatprep.subr.bf16.mxu0 0
    %1449 = vmatpush1.bf16.msra.mxu0 %v1409
    %1450 = vmatprep.subr.bf16.mxu0 0
    %1451 = vmatpush1.bf16.msra.mxu0 %v1410
    %1452 = vmatprep.subr.bf16.mxu0 0
    %1453 = vmatpush1.bf16.msra.mxu0 %v1411
    %1454 = vmatprep.subr.bf16.mxu0 0
    %1455 = vmatpush1.bf16.msra.mxu0 %v1412
    %1456 = vmatprep.subr.bf16.mxu0 0
    %1457 = vmatpush1.bf16.msra.mxu0 %v1413
    %1458 = vmatprep.subr.bf16.mxu0 0
    %1459 = vmatpush1.bf16.msra.mxu0 %v1414
    %1460 = vmatprep.subr.bf16.mxu0 0
    %1461 = vmatpush1.bf16.msra.mxu0 %v1415
    %1462 = vmatprep.subr.bf16.mxu0 0
    %1463 = vmatpush1.bf16.msra.mxu0 %v1416
    %1464 = vmatprep.subr.bf16.mxu0 0
    %1465 = vmatpush1.bf16.msra.mxu0 %v1417
    %1466 = vmatprep.mubr.bf16.mxu0 %v1337
    %1467 = vmatmul.mubr.bf16.gmra.mrb[0].mxu0 %v1336
    %v1468 = vpop.f32.mrb[0].mxu0
    %v1469 = vadd.f32 %v199, %v1468
    %v1470 = vpop.f32.mrb[0].mxu0
    %v1471 = vpop.f32.mrb[0].mxu0
    %v1472 = vpop.f32.mrb[0].mxu0
    %1473 = vdwg.mxu0
    %v1474 = vtanh.pop %v1469
    %v1475 = vpack.c.bf16 %v1474, %v1474
    %v1492 = vunpack.c.l.b16 %v180
    %v1493 = vunpack.c.l.b16 %v181
    %v1494 = vunpack.c.l.b16 %v182
    %v1495 = vunpack.c.l.b16 %v183
    %v1496 = vunpack.c.l.b16 %v184
    %v1497 = vunpack.c.l.b16 %v185
    %v1498 = vunpack.c.l.b16 %v186
    %v1499 = vunpack.c.l.b16 %v187
    %v1500 = vunpack.c.l.b16 %v188
    %v1501 = vunpack.c.l.b16 %v189
    %v1502 = vunpack.c.l.b16 %v190
    %v1503 = vunpack.c.l.b16 %v191
    %v1504 = vunpack.c.l.b16 %v192
    %v1505 = vunpack.c.l.b16 %v193
    %v1506 = vunpack.c.l.b16 %v194
    %v1507 = vunpack.c.l.b16 %v195
    %v1508 = vpack.c.b16 %v1493, %v1492
    %v1509 = vpack.c.b16 %v1495, %v1494
    %v1510 = vpack.c.b16 %v1497, %v1496
    %v1511 = vpack.c.b16 %v1499, %v1498
    %v1512 = vpack.c.b16 %v1501, %v1500
    %v1513 = vpack.c.b16 %v1503, %v1502
    %v1514 = vpack.c.b16 %v1505, %v1504
    %v1515 = vpack.c.b16 %v1507, %v1506
    %1524 = vmatprep.subr.bf16.mxu0 0
    %1525 = vmatpush1.bf16.msra.mxu0 %v1508
    %1526 = vmatprep.subr.bf16.mxu0 0
    %1527 = vmatpush1.bf16.msra.mxu0 %v1509
    %1528 = vmatprep.subr.bf16.mxu0 0
    %1529 = vmatpush1.bf16.msra.mxu0 %v1510
    %1530 = vmatprep.subr.bf16.mxu0 0
    %1531 = vmatpush1.bf16.msra.mxu0 %v1511
    %1532 = vmatprep.subr.bf16.mxu0 0
    %1533 = vmatpush1.bf16.msra.mxu0 %v1512
    %1534 = vmatprep.subr.bf16.mxu0 0
    %1535 = vmatpush1.bf16.msra.mxu0 %v1513
    %1536 = vmatprep.subr.bf16.mxu0 0
    %1537 = vmatpush1.bf16.msra.mxu0 %v1514
    %1538 = vmatprep.subr.bf16.mxu0 0
    %1539 = vmatpush1.bf16.msra.mxu0 %v1515
    %1540 = vmatprep.subr.bf16.mxu0 0
    %1541 = vmatpush1.bf16.msra.mxu0 0
    %1542 = vmatprep.subr.bf16.mxu0 0
    %1543 = vmatpush1.bf16.msra.mxu0 0
    %1544 = vmatprep.subr.bf16.mxu0 0
    %1545 = vmatpush1.bf16.msra.mxu0 0
    %1546 = vmatprep.subr.bf16.mxu0 0
    %1547 = vmatpush1.bf16.msra.mxu0 0
    %1548 = vmatprep.subr.bf16.mxu0 0
    %1549 = vmatpush1.bf16.msra.mxu0 0
    %1550 = vmatprep.subr.bf16.mxu0 0
    %1551 = vmatpush1.bf16.msra.mxu0 0
    %1552 = vmatprep.subr.bf16.mxu0 0
    %1553 = vmatpush1.bf16.msra.mxu0 0
    %1554 = vmatprep.subr.bf16.mxu0 0
    %1555 = vmatpush1.bf16.msra.mxu0 0
    %1556 = vmatprep.mubr.bf16.mxu0 0
    %1557 = vmatmul.mubr.bf16.gmra.mrb[0].mxu0 %v1475
    %v1558 = vpop.f32.mrb[0].mxu0
    %v1559 = vadd.f32 %v202, %v1558
    %v1560 = vpop.f32.mrb[0].mxu0
    %v1561 = vpop.f32.mrb[0].mxu0
    %v1562 = vpop.f32.mrb[0].mxu0
    %1563 = vdwg.mxu0
    %v1564 = vpack.c.bf16 %v1156, %v1156
    %v1565 = vpack.c.bf16 %v1202, %v1202
    %v1566 = vpack.c.bf16 %v1274, %v1274
    %v1567 = vpack.c.bf16 %v1320, %v1320
    %v1571 = vunpack.c.l.s4 1983009808
    %v1572 = vunpack.c.0.s8 %v1571
    %v1573 = vlaneseq
    %v1574 = vshrl.u32 %v1573, 7
    %v1575 = vsub.s32 %v1572, %v1574
    %v1576 = vrot.slane %v43, %v1575
    %v1578 = vunpack.c.l.s4 1983009808
    %v1579 = vunpack.c.0.s8 %v1578
    %v1580 = vlaneseq
    %v1581 = vshrl.u32 %v1580, 7
    %v1582 = vsub.s32 %v1579, %v1581
    %v1583 = vrot.slane %v44, %v1582
    %v1585 = vshrl.u32 %v1576, 16
    %v1587 = vrot.slane %v1585, 7
    %v1588 = vshll.u32 %v1576, 16
    %v1590 = vor.u32 %v1587, %v1588
    %v1592 = vshrl.u32 %v1583, 16
    %v1594 = vrot.slane %v1592, 7
    %v1595 = vshll.u32 %v1583, 16
    %v1597 = vor.u32 %v1594, %v1595
    %v1602 = vcombine.low %v1564, %v1566
    %v1604 = vunpack.c.l.s4 1983009808
    %v1605 = vunpack.c.0.s8 %v1604
    %v1606 = vlaneseq
    %v1607 = vshrl.u32 %v1606, 7
    %v1608 = vsub.s32 %v1605, %v1607
    %v1609 = vrot.slane %v1602, %v1608
    %v1611 = vunpack.c.l.s4 1983009808
    %v1612 = vunpack.c.0.s8 %v1611
    %v1613 = vlaneseq
    %v1614 = vshrl.u32 %v1613, 7
    %v1615 = vsub.s32 %v1612, %v1614
    %v1616 = vrot.slane %v1590, %v1615
    %v1617 = vcombine.low %v1609, %v1616
    %v1618 = vcombine.high %v1609, %v1616
    %v1619 = vcombine.low %v1565, %v1567
    %v1621 = vunpack.c.l.s4 1983009808
    %v1622 = vunpack.c.0.s8 %v1621
    %v1623 = vlaneseq
    %v1624 = vshrl.u32 %v1623, 7
    %v1625 = vsub.s32 %v1622, %v1624
    %v1626 = vrot.slane %v1619, %v1625
    %v1628 = vunpack.c.l.s4 1983009808
    %v1629 = vunpack.c.0.s8 %v1628
    %v1630 = vlaneseq
    %v1631 = vshrl.u32 %v1630, 7
    %v1632 = vsub.s32 %v1629, %v1631
    %v1633 = vrot.slane %v1597, %v1632
    %v1634 = vcombine.low %v1626, %v1633
    %v1635 = vcombine.high %v1626, %v1633
    %vm1636 = vsmask.f32 1280
    %vm1637 = vsmask.f32 3336
    %vm1638 = vmor %vm1636, %vm1637
    %vm1639 = vsmask.f32 5392
    %vm1640 = vmor %vm1638, %vm1639
    %vm1641 = vsmask.f32 7448
    %vm1642 = vmor %vm1640, %vm1641
    %v1644 = vshrl.u32 %v1617, 16
    %v1646 = vrot.slane %v1644, 6
    %v1647 = vshll.u32 %v1617, 16
    %v1649 = vrot.slane %v1647, 7
    %v1650 = vor.u32 %v1646, %v1649
    %v1651 = vrot.slane %v1650, 2
    %v1653 = vshll.u32 %v1618, 16
    %v1655 = vrot.slane %v1653, 7
    %v1656 = vsel %vm1642, %v1651, %v1655
    %v1658 = vshrl.u32 %v1634, 16
    %v1660 = vrot.slane %v1658, 6
    %v1661 = vshll.u32 %v1634, 16
    %v1663 = vrot.slane %v1661, 7
    %v1664 = vor.u32 %v1660, %v1663
    %v1665 = vrot.slane %v1664, 2
    %v1667 = vshll.u32 %v1635, 16
    %v1669 = vrot.slane %v1667, 7
    %v1670 = vsel %vm1642, %v1665, %v1669
    %v1671 = vcombine.low %v1656, %v1670
    %v1672 = vcombine.high %v1656, %v1670
    %v1674 = vunpack.c.l.s4 1983009808
    %v1675 = vunpack.c.0.s8 %v1674
    %v1676 = vlaneseq
    %v1677 = vshrl.u32 %v1676, 7
    %v1678 = vsub.s32 %v1675, %v1677
    %v1679 = vrot.slane %v1671, %v1678
    %v1681 = vunpack.c.l.s4 1983009808
    %v1682 = vunpack.c.0.s8 %v1681
    %v1683 = vlaneseq
    %v1684 = vshrl.u32 %v1683, 7
    %v1685 = vsub.s32 %v1682, %v1684
    %v1686 = vrot.slane %v1672, %v1685
    %v1687 = vcombine.high %v1679, %v1679
    %v1739 = vunpack.c.l.b16 %v132
    %v1740 = vunpack.c.l.b16 %v133
    %v1741 = vunpack.c.l.b16 %v134
    %v1742 = vunpack.c.l.b16 %v135
    %v1743 = vunpack.c.l.b16 %v136
    %v1744 = vunpack.c.l.b16 %v137
    %v1745 = vunpack.c.l.b16 %v138
    %v1746 = vunpack.c.l.b16 %v139
    %v1747 = vunpack.c.l.b16 %v140
    %v1748 = vunpack.c.l.b16 %v141
    %v1749 = vunpack.c.l.b16 %v142
    %v1750 = vunpack.c.l.b16 %v143
    %v1751 = vunpack.c.l.b16 %v144
    %v1752 = vunpack.c.l.b16 %v145
    %v1753 = vunpack.c.l.b16 %v146
    %v1754 = vunpack.c.l.b16 %v147
    %v1755 = vunpack.c.l.b16 %v148
    %v1756 = vunpack.c.l.b16 %v149
    %v1757 = vunpack.c.l.b16 %v150
    %v1758 = vunpack.c.l.b16 %v151
    %v1759 = vunpack.c.l.b16 %v152
    %v1760 = vunpack.c.l.b16 %v153
    %v1761 = vunpack.c.l.b16 %v154
    %v1762 = vunpack.c.l.b16 %v155
    %v1763 = vunpack.c.l.b16 %v156
    %v1764 = vunpack.c.l.b16 %v157
    %v1765 = vunpack.c.l.b16 %v158
    %v1766 = vunpack.c.l.b16 %v159
    %v1767 = vunpack.c.l.b16 %v160
    %v1768 = vunpack.c.l.b16 %v161
    %v1769 = vunpack.c.l.b16 %v162
    %v1770 = vunpack.c.l.b16 %v163
    %v1771 = vunpack.c.l.b16 %v164
    %v1772 = vunpack.c.l.b16 %v165
    %v1773 = vunpack.c.l.b16 %v166
    %v1774 = vunpack.c.l.b16 %v167
    %v1775 = vunpack.c.l.b16 %v168
    %v1776 = vunpack.c.l.b16 %v169
    %v1777 = vunpack.c.l.b16 %v170
    %v1778 = vunpack.c.l.b16 %v171
    %v1779 = vunpack.c.l.b16 %v172
    %v1780 = vunpack.c.l.b16 %v173
    %v1781 = vunpack.c.l.b16 %v174
    %v1782 = vunpack.c.l.b16 %v175
    %v1783 = vunpack.c.l.b16 %v176
    %v1784 = vunpack.c.l.b16 %v177
    %v1785 = vunpack.c.l.b16 %v178
    %v1786 = vunpack.c.l.b16 %v179
    %v1787 = vpack.c.b16 %v1740, %v1739
    %v1788 = vpack.c.b16 %v1742, %v1741
    %v1789 = vpack.c.b16 %v1744, %v1743
    %v1790 = vpack.c.b16 %v1746, %v1745
    %v1791 = vpack.c.b16 %v1748, %v1747
    %v1792 = vpack.c.b16 %v1750, %v1749
    %v1793 = vpack.c.b16 %v1752, %v1751
    %v1794 = vpack.c.b16 %v1754, %v1753
    %v1795 = vpack.c.b16 %v1756, %v1755
    %v1796 = vpack.c.b16 %v1758, %v1757
    %v1797 = vpack.c.b16 %v1760, %v1759
    %v1798 = vpack.c.b16 %v1762, %v1761
    %v1799 = vpack.c.b16 %v1764, %v1763
    %v1800 = vpack.c.b16 %v1766, %v1765
    %v1801 = vpack.c.b16 %v1768, %v1767
    %v1802 = vpack.c.b16 %v1770, %v1769
    %v1803 = vpack.c.b16 %v1772, %v1771
    %v1804 = vpack.c.b16 %v1774, %v1773
    %v1805 = vpack.c.b16 %v1776, %v1775
    %v1806 = vpack.c.b16 %v1778, %v1777
    %v1807 = vpack.c.b16 %v1780, %v1779
    %v1808 = vpack.c.b16 %v1782, %v1781
    %v1809 = vpack.c.b16 %v1784, %v1783
    %v1810 = vpack.c.b16 %v1786, %v1785
    %1835 = vmatprep.subr.bf16.mxu0 0
    %1836 = vmatpush1.bf16.msra.mxu0 %v1787
    %1837 = vmatprep.subr.bf16.mxu0 0
    %1838 = vmatpush1.bf16.msra.mxu0 %v1788
    %1839 = vmatprep.subr.bf16.mxu0 0
    %1840 = vmatpush1.bf16.msra.mxu0 %v1789
    %1841 = vmatprep.subr.bf16.mxu0 0
    %1842 = vmatpush1.bf16.msra.mxu0 %v1790
    %1843 = vmatprep.subr.bf16.mxu0 0
    %1844 = vmatpush1.bf16.msra.mxu0 %v1791
    %1845 = vmatprep.subr.bf16.mxu0 0
    %1846 = vmatpush1.bf16.msra.mxu0 %v1792
    %1847 = vmatprep.subr.bf16.mxu0 0
    %1848 = vmatpush1.bf16.msra.mxu0 %v1793
    %1849 = vmatprep.subr.bf16.mxu0 0
    %1850 = vmatpush1.bf16.msra.mxu0 %v1794
    %1851 = vmatprep.subr.bf16.mxu0 0
    %1852 = vmatpush1.bf16.msra.mxu0 %v1795
    %1853 = vmatprep.subr.bf16.mxu0 0
    %1854 = vmatpush1.bf16.msra.mxu0 %v1796
    %1855 = vmatprep.subr.bf16.mxu0 0
    %1856 = vmatpush1.bf16.msra.mxu0 %v1797
    %1857 = vmatprep.subr.bf16.mxu0 0
    %1858 = vmatpush1.bf16.msra.mxu0 %v1798
    %1859 = vmatprep.subr.bf16.mxu0 0
    %1860 = vmatpush1.bf16.msra.mxu0 %v1799
    %1861 = vmatprep.subr.bf16.mxu0 0
    %1862 = vmatpush1.bf16.msra.mxu0 %v1800
    %1863 = vmatprep.subr.bf16.mxu0 0
    %1864 = vmatpush1.bf16.msra.mxu0 %v1801
    %1865 = vmatprep.subr.bf16.mxu0 0
    %1866 = vmatpush1.bf16.msra.mxu0 %v1802
    %1867 = vmatprep.mubr.bf16.mxu0 %v1687
    %1868 = vmatmul.mubr.bf16.gmra.mrb[0].mxu0 %v1679
    %v1869 = vpop.f32.mrb[0].mxu0
    %v1870 = vadd.f32 %v200, %v1869
    %v1871 = vpop.f32.mrb[0].mxu0
    %v1872 = vpop.f32.mrb[0].mxu0
    %v1873 = vpop.f32.mrb[0].mxu0
    %1874 = vdwg.mxu0
    %1875 = vmatprep.subr.bf16.mxu0 0
    %1876 = vmatpush1.bf16.msra.mxu0 %v1803
    %1877 = vmatprep.subr.bf16.mxu0 0
    %1878 = vmatpush1.bf16.msra.mxu0 %v1804
    %1879 = vmatprep.subr.bf16.mxu0 0
    %1880 = vmatpush1.bf16.msra.mxu0 %v1805
    %1881 = vmatprep.subr.bf16.mxu0 0
    %1882 = vmatpush1.bf16.msra.mxu0 %v1806
    %1883 = vmatprep.subr.bf16.mxu0 0
    %1884 = vmatpush1.bf16.msra.mxu0 %v1807
    %1885 = vmatprep.subr.bf16.mxu0 0
    %1886 = vmatpush1.bf16.msra.mxu0 %v1808
    %1887 = vmatprep.subr.bf16.mxu0 0
    %1888 = vmatpush1.bf16.msra.mxu0 %v1809
    %1889 = vmatprep.subr.bf16.mxu0 0
    %1890 = vmatpush1.bf16.msra.mxu0 %v1810
    %1891 = vmatprep.subr.bf16.mxu0 0
    %1892 = vmatpush1.bf16.msra.mxu0 0
    %1893 = vmatprep.subr.bf16.mxu0 0
    %1894 = vmatpush1.bf16.msra.mxu0 0
    %1895 = vmatprep.subr.bf16.mxu0 0
    %1896 = vmatpush1.bf16.msra.mxu0 0
    %1897 = vmatprep.subr.bf16.mxu0 0
    %1898 = vmatpush1.bf16.msra.mxu0 0
    %1899 = vmatprep.subr.bf16.mxu0 0
    %1900 = vmatpush1.bf16.msra.mxu0 0
    %1901 = vmatprep.subr.bf16.mxu0 0
    %1902 = vmatpush1.bf16.msra.mxu0 0
    %1903 = vmatprep.subr.bf16.mxu0 0
    %1904 = vmatpush1.bf16.msra.mxu0 0
    %1905 = vmatprep.subr.bf16.mxu0 0
    %1906 = vmatpush1.bf16.msra.mxu0 0
    %1907 = vmatprep.mubr.bf16.mxu0 0
    %1908 = vmatmul.mubr.bf16.gmra.mrb[0].mxu0 %v1686
    %v1909 = vpop.f32.mrb[0].mxu0
    %v1910 = vadd.f32 %v1870, %v1909
    %v1911 = vpop.f32.mrb[0].mxu0
    %v1912 = vpop.f32.mrb[0].mxu0
    %v1913 = vpop.f32.mrb[0].mxu0
    %1914 = vdwg.mxu0
    %v1916 = vcombine.high %v1910, %v1910
    %v1918 = vtanh.pop %v1910
    %v1919 = vtanh.pop %v1916
    %v1920 = vmul.f32 %v1918, %v201
    %v1921 = vmul.f32 %v1919, %v201
    %v1922 = vsel %vm1117, %v1920, 0.0
    %1923 = vadd.xlane.f32.xlu0 %v1922
    %v1924 = vpop.xlane.xlu0 %1923
    %v1925 = vsel %vm1117, %v1921, 0.0
    %1926 = vadd.xlane.f32.xlu0 %v1925
    %v1927 = vpop.xlane.xlu0 %1926
    %1929 = vset.pattern.permute.xlu0 0
    %1930 = vperm.xlu0 %1929, %v203
    %v1931 = vpop.permute.xlu0 %1930
    %v1933 = vadd.f32 %v1924, %v1931
    %v1934 = vadd.f32 %v1927, %v1931
    %v1937 = vadd.s32 %v725, 4294967292
    %v1938 = vlaneseq
    %v1939 = vshrl.u32 %v1938, 7
    %v1940 = vsub.s32 %v1937, %v1939
    %v1941 = vrot.slane %v1933, %v1940
    %v1942 = vlaneseq
    %v1943 = vshrl.u32 %v1942, 7
    %v1944 = vsub.s32 %v1937, %v1943
    %v1945 = vrot.slane %v1934, %v1944
    %v1946 = vsel %vm1328, %v1945, %v1941
    %vm1948 = vcmask 31744
    %v1949 = vsel %vm1948, %v1559, %v1946
    %v1950 = vsel %vm1113, %v1949, 0.0
    %1951 = vst [vmem:[#allocation5] sm:$0x3] %v1950
    // Predicated region
    $region30: #{tpu_custom_call.1} parent=1 // pred_check
      _
    $region31: #{tpu_custom_call.1} parent=1 // pred_check_branch
      %1953 = sbr.rel (0) target = $region33
    $region32: #{tpu_custom_call.1} parent=1 // pred_region
      %s1955 = ssub.s32 32, 32
      %1956 = vsyncadd [#allocation4], %s1955
      %s1958 = sshll.u32 [#allocation5], 4
      %s1959 = int_to_ptr.vmem [resolvable:$true] %s1958
      %1961 = dma.vmem_to_hbm [thread:$0]  %s1959, 32, %s6, [#allocation4]
    $region33: #{tpu_custom_call.1} parent=1 // pred_fallthru
      _
    // Predicated region
    $region34: #{tpu_custom_call.1} parent=1 // pred_check
      _
    $region35: #{tpu_custom_call.1} parent=1 // pred_check_branch
      %1963 = sbr.rel (0) target = $region37
    $region36: #{tpu_custom_call.1} parent=1 // pred_region
      %1964 = dma.done [#allocation4], 32
    $region37: #{tpu_custom_call.1} parent=1 // pred_fallthru
      _
    %1965 = vsyncpa [#allocation3], 1
    %1966 = vsyncpa [#allocation4], 1

</llo_original>
